<compile_context>
chip_gen: v7x
topology: tpu7x:2x2x1
jax: 0.10.0
libtpu: 0.0.40
codegen_flags: <defaults>
</compile_context>

<pallas_src>
import functools

import jax
import jax.numpy as jnp
from jax.experimental import pallas as pl
from jax.experimental.pallas import tpu as pltpu

FEATURES = 512
IN_DIM = 28 * 28   # 784
OUT_DIM = 10
PAD_OUT = 128      # lane-dense logits head (last dim padded to 128)
MAX_BM = 256       # max batch tile (fills the 256x256 MXU on v6e/v7x)


def mlp_kernel(x_ref, w1_ref, b1_ref, w2_ref, b2_ref, w3_ref, b3_ref, o_ref):
    """Fused 3-layer MLP: two ReLU hidden layers + (padded) logits head, all in VMEM."""
    x = x_ref[...]                                                   # (bm, 784)
    h1 = jnp.dot(x, w1_ref[...], preferred_element_type=jnp.float32)
    h1 = jnp.maximum(h1 + b1_ref[...], 0.0)                          # (bm, 512)
    h2 = jnp.dot(h1, w2_ref[...], preferred_element_type=jnp.float32)
    h2 = jnp.maximum(h2 + b2_ref[...], 0.0)                          # (bm, 512)
    logits = jnp.dot(h2, w3_ref[...], preferred_element_type=jnp.float32)
    o_ref[...] = (logits + b3_ref[...]).astype(o_ref.dtype)          # (bm, 128)


@functools.partial(jax.jit, static_argnames=("bm",))
def _mlp_forward_impl(x2, w1, b1, w2, b2, w3, b3, *, bm):
    """x2: (B, 784) float32 -> padded logits (B, 10). bm: static batch tile."""
    B = x2.shape[0]

    # Pad batch up to a multiple of bm (padded rows produce garbage logits that
    # are sliced off below; they never mix with real rows).
    Bp = ((B + bm - 1) // bm) * bm
    if Bp != B:
        x2 = jnp.pad(x2, ((0, Bp - B), (0, 0)))

    # Pad the 10-wide head to 128 lanes (zero columns -> zero logits, sliced off below).
    w3p = jnp.pad(w3.astype(jnp.float32), ((0, 0), (0, PAD_OUT - OUT_DIM)))
    b3p = jnp.pad(b3.astype(jnp.float32), ((0, 0), (0, PAD_OUT - OUT_DIM)))

    grid = (Bp // bm,)
    full = lambda i: (0, 0)  # weights/biases: same block every step -> VMEM-resident

    flops = 2 * Bp * (IN_DIM * FEATURES + FEATURES * FEATURES + FEATURES * PAD_OUT)
    bytes_accessed = 4 * (
        Bp * IN_DIM                                  # x
        + IN_DIM * FEATURES + FEATURES               # W1, b1
        + FEATURES * FEATURES + FEATURES             # W2, b2
        + FEATURES * PAD_OUT + PAD_OUT               # W3, b3 (padded)
        + Bp * PAD_OUT                               # logits out
    )

    out = pl.pallas_call(
        mlp_kernel,
        out_shape=jax.ShapeDtypeStruct((Bp, PAD_OUT), jnp.float32),
        grid_spec=pltpu.PrefetchScalarGridSpec(
            num_scalar_prefetch=0,
            grid=grid,
            in_specs=[
                pl.BlockSpec((bm, IN_DIM), lambda i: (i, 0)),        # x tile
                pl.BlockSpec((IN_DIM, FEATURES), full),              # W1
                pl.BlockSpec((1, FEATURES), full),                   # b1
                pl.BlockSpec((FEATURES, FEATURES), full),            # W2
                pl.BlockSpec((1, FEATURES), full),                   # b2
                pl.BlockSpec((FEATURES, PAD_OUT), full),             # W3 (padded)
                pl.BlockSpec((1, PAD_OUT), full),                    # b3 (padded)
            ],
            out_specs=pl.BlockSpec((bm, PAD_OUT), lambda i: (i, 0)),
        ),
        compiler_params=pltpu.CompilerParams(
            dimension_semantics=("parallel",),                        # megacore-shard batch
        ),
        cost_estimate=pl.CostEstimate(
            flops=flops, transcendentals=0, bytes_accessed=bytes_accessed
        ),
    )(x2, w1, b1, w2, b2, w3p, b3p)

    return out[:B, :OUT_DIM]


def mlp_forward(x, w1, b1, w2, b2, w3, b3, *, bm=None):
    """x: (B, 1, 28, 28) or (B, 28, 28) float32 -> logits (B, 10).

    Weights: w1 (784,512), w2 (512,512), w3 (512,10); biases (1,N).
    bm: batch tile. If None, picks min(256, B rounded up to a multiple of 8) so
    small batches don't pad all the way to 256 rows.
    """
    B = x.shape[0]
    x2 = x.reshape(B, -1).astype(jnp.float32)                        # nn.Flatten
    assert x2.shape[1] == IN_DIM

    if bm is None:
        bm = min(MAX_BM, ((B + 7) // 8) * 8)                          # sublane-aligned
    return _mlp_forward_impl(x2, w1, b1, w2, b2, w3, b3, bm=bm)


def init_linear(key, fan_in, fan_out):
    """Deterministic PyTorch-style init: U(-1/sqrt(fan_in), 1/sqrt(fan_in)).
    Returns weight already transposed to (fan_in, fan_out)."""
    kw, kb = jax.random.split(key)
    bound = 1.0 / jnp.sqrt(jnp.float32(fan_in))
    w = jax.random.uniform(kw, (fan_in, fan_out), jnp.float32, -bound, bound)
    b = jax.random.uniform(kb, (1, fan_out), jnp.float32, -bound, bound)
    return w, b


if __name__ == "__main__":
    key = jax.random.PRNGKey(0)
    kx, k1, k2, k3 = jax.random.split(key, 4)

    # Small batch consistent with MNIST-style input (B, 1, 28, 28).
    B = 64
    x = jax.random.normal(kx, (B, 1, 28, 28), jnp.float32)

    w1, b1 = init_linear(k1, IN_DIM, FEATURES)
    w2, b2 = init_linear(k2, FEATURES, FEATURES)
    w3, b3 = init_linear(k3, FEATURES, OUT_DIM)

    logits = mlp_forward(x, w1, b1, w2, b2, w3, b3)
    jax.block_until_ready(logits)

    # Pure-JAX reference check
    xf = x.reshape(B, -1)
    h1 = jnp.maximum(xf @ w1 + b1, 0.0)
    h2 = jnp.maximum(h1 @ w2 + b2, 0.0)
    ref = h2 @ w3 + b3
    assert logits.shape == (B, OUT_DIM)
    assert jnp.allclose(logits, ref, atol=1e-4, rtol=1e-4)

    print("KERNEL_OK")
</pallas_src>

<mosaic_0001>
module attributes {stable_mosaic.version = 11 : i64} {
  func.func @mlp_kernel(%arg0: i32, %arg1: memref<64x784xf32, #tpu.memory_space<vmem>>, %arg2: memref<784x512xf32, #tpu.memory_space<vmem>>, %arg3: memref<1x512xf32, #tpu.memory_space<vmem>>, %arg4: memref<512x512xf32, #tpu.memory_space<vmem>>, %arg5: memref<1x512xf32, #tpu.memory_space<vmem>>, %arg6: memref<512x128xf32, #tpu.memory_space<vmem>>, %arg7: memref<1x128xf32, #tpu.memory_space<vmem>>, %arg8: memref<64x128xf32, #tpu.memory_space<vmem>>) attributes {dimension_semantics = [#tpu.dimension_semantics<parallel>], iteration_bounds = array<i64: 1>, scalar_prefetch = 0 : i64, scratch_operands = 0 : i64, tpu.core_type = #tpu.core_type<tc>, window_params = [{transform_indices = @transform_0, window_bounds = array<i64: 64, 784>}, {pipeline_mode = #tpu.pipeline_mode<synchronous>, transform_indices = @transform_1, window_bounds = array<i64: 784, 512>}, {pipeline_mode = #tpu.pipeline_mode<synchronous>, transform_indices = @transform_2, window_bounds = array<i64: 1, 512>}, {pipeline_mode = #tpu.pipeline_mode<synchronous>, transform_indices = @transform_3, window_bounds = array<i64: 512, 512>}, {pipeline_mode = #tpu.pipeline_mode<synchronous>, transform_indices = @transform_4, window_bounds = array<i64: 1, 512>}, {pipeline_mode = #tpu.pipeline_mode<synchronous>, transform_indices = @transform_5, window_bounds = array<i64: 512, 128>}, {pipeline_mode = #tpu.pipeline_mode<synchronous>, transform_indices = @transform_6, window_bounds = array<i64: 1, 128>}, {transform_indices = @transform_7, window_bounds = array<i64: 64, 128>}]} {
    %c0 = arith.constant 0 : index
    %c0_0 = arith.constant 0 : index
    %0 = vector.load %arg1[%c0, %c0_0] : memref<64x784xf32, #tpu.memory_space<vmem>>, vector<64x784xf32>
    %c0_1 = arith.constant 0 : index
    %c0_2 = arith.constant 0 : index
    %1 = vector.load %arg2[%c0_1, %c0_2] : memref<784x512xf32, #tpu.memory_space<vmem>>, vector<784x512xf32>
    %cst = arith.constant dense<0.000000e+00> : vector<64x512xf32>
    %2 = tpu.matmul %0, %1, %cst {dimension_numbers = #tpu.dot_dimension_numbers<[1], [0], [0], [1], [0, 0, 1, 1], [], []>} : vector<64x784xf32>, vector<784x512xf32>, vector<64x512xf32> -> vector<64x512xf32>
    %c0_3 = arith.constant 0 : index
    %c0_4 = arith.constant 0 : index
    %3 = vector.load %arg3[%c0_3, %c0_4] : memref<1x512xf32, #tpu.memory_space<vmem>>, vector<1x512xf32>
    %4 = vector.broadcast %3 : vector<1x512xf32> to vector<64x512xf32>
    %5 = arith.addf %2, %4 : vector<64x512xf32>
    %cst_5 = arith.constant 0.000000e+00 : f32
    %6 = vector.broadcast %cst_5 : f32 to vector<64x512xf32>
    %7 = arith.maximumf %5, %6 : vector<64x512xf32>
    %c0_6 = arith.constant 0 : index
    %c0_7 = arith.constant 0 : index
    %8 = vector.load %arg4[%c0_6, %c0_7] : memref<512x512xf32, #tpu.memory_space<vmem>>, vector<512x512xf32>
    %cst_8 = arith.constant dense<0.000000e+00> : vector<64x512xf32>
    %9 = tpu.matmul %7, %8, %cst_8 {dimension_numbers = #tpu.dot_dimension_numbers<[1], [0], [0], [1], [0, 0, 1, 1], [], []>} : vector<64x512xf32>, vector<512x512xf32>, vector<64x512xf32> -> vector<64x512xf32>
    %c0_9 = arith.constant 0 : index
    %c0_10 = arith.constant 0 : index
    %10 = vector.load %arg5[%c0_9, %c0_10] : memref<1x512xf32, #tpu.memory_space<vmem>>, vector<1x512xf32>
    %11 = vector.broadcast %10 : vector<1x512xf32> to vector<64x512xf32>
    %12 = arith.addf %9, %11 : vector<64x512xf32>
    %cst_11 = arith.constant 0.000000e+00 : f32
    %13 = vector.broadcast %cst_11 : f32 to vector<64x512xf32>
    %14 = arith.maximumf %12, %13 : vector<64x512xf32>
    %c0_12 = arith.constant 0 : index
    %c0_13 = arith.constant 0 : index
    %15 = vector.load %arg6[%c0_12, %c0_13] : memref<512x128xf32, #tpu.memory_space<vmem>>, vector<512x128xf32>
    %cst_14 = arith.constant dense<0.000000e+00> : vector<64x128xf32>
    %16 = tpu.matmul %14, %15, %cst_14 {dimension_numbers = #tpu.dot_dimension_numbers<[1], [0], [0], [1], [0, 0, 1, 1], [], []>} : vector<64x512xf32>, vector<512x128xf32>, vector<64x128xf32> -> vector<64x128xf32>
    %c0_15 = arith.constant 0 : index
    %c0_16 = arith.constant 0 : index
    %17 = vector.load %arg7[%c0_15, %c0_16] : memref<1x128xf32, #tpu.memory_space<vmem>>, vector<1x128xf32>
    %18 = vector.broadcast %17 : vector<1x128xf32> to vector<64x128xf32>
    %19 = arith.addf %16, %18 : vector<64x128xf32>
    %c0_17 = arith.constant 0 : index
    %c0_18 = arith.constant 0 : index
    %20 = vector.load %arg8[%c0_17, %c0_18] : memref<64x128xf32, #tpu.memory_space<vmem>>, vector<64x128xf32>
    tpu.vector_store %arg8[%c0_17, %c0_18], %19 {strides = array<i32>} : memref<64x128xf32, #tpu.memory_space<vmem>>, vector<64x128xf32>,
    return
  }
  func.func @transform_0(%arg0: i32) -> (i32, i32) {
    %c0_i32 = arith.constant 0 : i32
    %c0_i32_0 = arith.constant 0 : i32
    return %arg0, %c0_i32 : i32, i32
  }
  func.func @transform_1(%arg0: i32) -> (i32, i32) {
    %c0_i32 = arith.constant 0 : i32
    %c0_i32_0 = arith.constant 0 : i32
    %c0_i32_1 = arith.constant 0 : i32
    return %c0_i32, %c0_i32_0 : i32, i32
  }
  func.func @transform_2(%arg0: i32) -> (i32, i32) {
    %c0_i32 = arith.constant 0 : i32
    %c0_i32_0 = arith.constant 0 : i32
    %c0_i32_1 = arith.constant 0 : i32
    return %c0_i32, %c0_i32_0 : i32, i32
  }
  func.func @transform_3(%arg0: i32) -> (i32, i32) {
    %c0_i32 = arith.constant 0 : i32
    %c0_i32_0 = arith.constant 0 : i32
    %c0_i32_1 = arith.constant 0 : i32
    return %c0_i32, %c0_i32_0 : i32, i32
  }
  func.func @transform_4(%arg0: i32) -> (i32, i32) {
    %c0_i32 = arith.constant 0 : i32
    %c0_i32_0 = arith.constant 0 : i32
    %c0_i32_1 = arith.constant 0 : i32
    return %c0_i32, %c0_i32_0 : i32, i32
  }
  func.func @transform_5(%arg0: i32) -> (i32, i32) {
    %c0_i32 = arith.constant 0 : i32
    %c0_i32_0 = arith.constant 0 : i32
    %c0_i32_1 = arith.constant 0 : i32
    return %c0_i32, %c0_i32_0 : i32, i32
  }
  func.func @transform_6(%arg0: i32) -> (i32, i32) {
    %c0_i32 = arith.constant 0 : i32
    %c0_i32_0 = arith.constant 0 : i32
    %c0_i32_1 = arith.constant 0 : i32
    return %c0_i32, %c0_i32_0 : i32, i32
  }
  func.func @transform_7(%arg0: i32) -> (i32, i32) {
    %c0_i32 = arith.constant 0 : i32
    %c0_i32_0 = arith.constant 0 : i32
    return %arg0, %c0_i32 : i32, i32
  }
}

</mosaic_0001>

<llo_original>
// kernel: _mlp_forward_impl.1
$region0: #{_mlp_forward_impl.1}
  #allocation0 [shape = 'u32[]', space=smem, size = 0x4, offset = 0x4, fixed_abs, tag = 'smem constant byte address 0x4 - core index']
  #allocation1 [shape = 'u32[144,128]{1,0:T(1,128)}', space=vmem, size = 0x12000, scoped, tag = 'internal scratch']
  %s0 = inlined_call_operand.hbm [shape: f32[64,784], index: 0, kind: input, shape index: {}]
  %s1 = inlined_call_operand.hbm [shape: f32[784,512], index: 1, kind: input, shape index: {}]
  %s2 = inlined_call_operand.hbm [shape: f32[1,512], index: 2, kind: input, shape index: {}]
  %s3 = inlined_call_operand.hbm [shape: f32[512,512], index: 3, kind: input, shape index: {}]
  %s4 = inlined_call_operand.hbm [shape: f32[1,512], index: 4, kind: input, shape index: {}]
  %s5 = inlined_call_operand.vmem [shape: f32[512,128], index: 5, kind: input, shape index: {}]
  %s6 = inlined_call_operand.vmem [shape: f32[1,128], index: 6, kind: input, shape index: {}]
  %s7 = inlined_call_operand.vmem [shape: f32[64,128], index: 7, kind: output, shape index: {}]
  %s8 = sld [smem:[#allocation0]]
  $region58: #{_mlp_forward_impl.1} parent=0
    _
  %s10 = ssub.s32 1, %s8
  %s11 = scalar_select 0, %s10, %s8
  $region1: #{_mlp_forward_impl.1} parent=0
    #allocation2 [shape = 'u8[229376]{0}', space=vmem, size = 0x38000, scoped, tag = 'input window, operand 0, single buffered']
    #allocation3 [shape = 's32[1]{0}', space=sflag, size = 0x4, scoped, tag = 'scoped memory for _mlp_forward_impl.1']
    #allocation4 [shape = 'u8[1605632]{0}', space=vmem, size = 0x188000, scoped, tag = 'input window, operand 1, single buffered']
    #allocation5 [shape = 's32[1]{0}', space=sflag, size = 0x4, scoped, tag = 'scoped memory for _mlp_forward_impl.1']
    #allocation6 [shape = 'u8[2048]{0}', space=vmem, size = 0x800, scoped, tag = 'input window, operand 2, single buffered']
    #allocation7 [shape = 'u8[1048576]{0}', space=vmem, size = 0x100000, scoped, tag = 'input window, operand 3, single buffered']
    #allocation8 [shape = 's32[1]{0}', space=sflag, size = 0x4, scoped, tag = 'scoped memory for _mlp_forward_impl.1']
    #allocation9 [shape = 'u8[2048]{0}', space=vmem, size = 0x800, scoped, tag = 'input window, operand 4, single buffered']
    %12 = vsyncpa [#allocation3], 0
    %13 = vsyncpa [#allocation5], 0
    %14 = vsyncpa [#allocation8], 0
    // Predicated region
    $region2: #{_mlp_forward_impl.1} parent=1 // pred_check
      _
    $region3: #{_mlp_forward_impl.1} parent=1 // pred_check_branch
      %16 = sbr.rel (0) target = $region5
    $region4: #{_mlp_forward_impl.1} parent=1 // pred_region
      %s18 = ssub.s32 7168, 7168
      %19 = vsyncadd [#allocation3], %s18
      %s20 = sshll.u32 [#allocation2], 4
      %s21 = int_to_ptr.vmem [resolvable:$true] %s20
      %26 = dma.hbm_to_vmem [thread:$0]  %s0, 7168, %s21, [#allocation3], 896, 896, 56
    $region5: #{_mlp_forward_impl.1} parent=1 // pred_fallthru
      _
    // Predicated region
    $region6: #{_mlp_forward_impl.1} parent=1 // pred_check
      _
    $region7: #{_mlp_forward_impl.1} parent=1 // pred_check_branch
      %28 = sbr.rel (0) target = $region9
    $region8: #{_mlp_forward_impl.1} parent=1 // pred_region
      %s30 = ssub.s32 50176, 50176
      %31 = vsyncadd [#allocation5], %s30
      %s32 = sshll.u32 [#allocation4], 4
      %s33 = int_to_ptr.vmem [resolvable:$true] %s32
      %38 = dma.hbm_to_vmem [thread:$0]  %s1, 50176, %s33, [#allocation5], 512, 512, 32
    $region9: #{_mlp_forward_impl.1} parent=1 // pred_fallthru
      _
    // Predicated region
    $region10: #{_mlp_forward_impl.1} parent=1 // pred_check
      _
    $region11: #{_mlp_forward_impl.1} parent=1 // pred_check_branch
      %40 = sbr.rel (0) target = $region13
    $region12: #{_mlp_forward_impl.1} parent=1 // pred_region
      %s42 = ssub.s32 64, 64
      %43 = vsyncadd [#allocation5], %s42
      %s45 = sshll.u32 [#allocation6], 4
      %s46 = int_to_ptr.vmem [resolvable:$true] %s45
      %48 = dma.hbm_to_vmem [thread:$0]  %s2, 64, %s46, [#allocation5]
    $region13: #{_mlp_forward_impl.1} parent=1 // pred_fallthru
      _
    // Predicated region
    $region14: #{_mlp_forward_impl.1} parent=1 // pred_check
      _
    $region15: #{_mlp_forward_impl.1} parent=1 // pred_check_branch
      %50 = sbr.rel (0) target = $region17
    $region16: #{_mlp_forward_impl.1} parent=1 // pred_region
      %s52 = ssub.s32 32768, 32768
      %53 = vsyncadd [#allocation8], %s52
      %s54 = sshll.u32 [#allocation7], 4
      %s55 = int_to_ptr.vmem [resolvable:$true] %s54
      %60 = dma.hbm_to_vmem [thread:$0]  %s3, 32768, %s55, [#allocation8], 512, 512, 32
    $region17: #{_mlp_forward_impl.1} parent=1 // pred_fallthru
      _
    // Predicated region
    $region18: #{_mlp_forward_impl.1} parent=1 // pred_check
      _
    $region19: #{_mlp_forward_impl.1} parent=1 // pred_check_branch
      %62 = sbr.rel (0) target = $region21
    $region20: #{_mlp_forward_impl.1} parent=1 // pred_region
      %s64 = ssub.s32 64, 64
      %65 = vsyncadd [#allocation8], %s64
      %s67 = sshll.u32 [#allocation9], 4
      %s68 = int_to_ptr.vmem [resolvable:$true] %s67
      %70 = dma.hbm_to_vmem [thread:$0]  %s4, 64, %s68, [#allocation8]
    $region21: #{_mlp_forward_impl.1} parent=1 // pred_fallthru
      _
    // Predicated region
    $region22: #{_mlp_forward_impl.1} parent=1 // pred_check
      _
    $region23: #{_mlp_forward_impl.1} parent=1 // pred_check_branch
      %72 = sbr.rel (0) target = $region25
    $region24: #{_mlp_forward_impl.1} parent=1 // pred_region
      _
    $region25: #{_mlp_forward_impl.1} parent=1 // pred_fallthru
      _
    // Predicated region
    $region26: #{_mlp_forward_impl.1} parent=1 // pred_check
      _
    $region27: #{_mlp_forward_impl.1} parent=1 // pred_check_branch
      %74 = sbr.rel (0) target = $region29
    $region28: #{_mlp_forward_impl.1} parent=1 // pred_region
      _
    $region29: #{_mlp_forward_impl.1} parent=1 // pred_fallthru
      _
    // Predicated region
    $region30: #{_mlp_forward_impl.1} parent=1 // pred_check
      _
    $region31: #{_mlp_forward_impl.1} parent=1 // pred_check_branch
      %76 = sbr.rel (0) target = $region33
    $region32: #{_mlp_forward_impl.1} parent=1 // pred_region
      %77 = dma.done [#allocation3], 7168
    $region33: #{_mlp_forward_impl.1} parent=1 // pred_fallthru
      _
    // Predicated region
    $region34: #{_mlp_forward_impl.1} parent=1 // pred_check
      _
    $region35: #{_mlp_forward_impl.1} parent=1 // pred_check_branch
      %79 = sbr.rel (0) target = $region37
    $region36: #{_mlp_forward_impl.1} parent=1 // pred_region
      %80 = dma.done [#allocation5], 50176
    $region37: #{_mlp_forward_impl.1} parent=1 // pred_fallthru
      _
    // Predicated region
    $region38: #{_mlp_forward_impl.1} parent=1 // pred_check
      _
    $region39: #{_mlp_forward_impl.1} parent=1 // pred_check_branch
      %82 = sbr.rel (0) target = $region41
    $region40: #{_mlp_forward_impl.1} parent=1 // pred_region
      %83 = dma.done [#allocation5], 64
    $region41: #{_mlp_forward_impl.1} parent=1 // pred_fallthru
      _
    // Predicated region
    $region42: #{_mlp_forward_impl.1} parent=1 // pred_check
      _
    $region43: #{_mlp_forward_impl.1} parent=1 // pred_check_branch
      %85 = sbr.rel (0) target = $region45
    $region44: #{_mlp_forward_impl.1} parent=1 // pred_region
      %86 = dma.done [#allocation8], 32768
    $region45: #{_mlp_forward_impl.1} parent=1 // pred_fallthru
      _
    // Predicated region
    $region46: #{_mlp_forward_impl.1} parent=1 // pred_check
      _
    $region47: #{_mlp_forward_impl.1} parent=1 // pred_check_branch
      %88 = sbr.rel (0) target = $region49
    $region48: #{_mlp_forward_impl.1} parent=1 // pred_region
      %89 = dma.done [#allocation8], 64
    $region49: #{_mlp_forward_impl.1} parent=1 // pred_fallthru
      _
    %v90 = vld [vmem:[#allocation2] sm:$0xff]
    %v91 = vld [vmem:[#allocation2 + $0x8] sm:$0xff]
    %v92 = vld [vmem:[#allocation2 + $0x10] sm:$0xff]
    %v93 = vld [vmem:[#allocation2 + $0x18] sm:$0xff]
    %v94 = vld [vmem:[#allocation2 + $0x20] sm:$0xff]
    %v95 = vld [vmem:[#allocation2 + $0x28] sm:$0xff]
    %v96 = vld [vmem:[#allocation2 + $0x30] sm:$0xff]
    %v97 = vld [vmem:[#allocation2 + $0x38] sm:$0xff]
    %v98 = vld [vmem:[#allocation2 + $0x40] sm:$0xff]
    %v99 = vld [vmem:[#allocation2 + $0x48] sm:$0xff]
    %v100 = vld [vmem:[#allocation2 + $0x50] sm:$0xff]
    %v101 = vld [vmem:[#allocation2 + $0x58] sm:$0xff]
    %v102 = vld [vmem:[#allocation2 + $0x60] sm:$0xff]
    %v103 = vld [vmem:[#allocation2 + $0x68] sm:$0xff]
    %v104 = vld [vmem:[#allocation2 + $0x70] sm:$0xff]
    %v105 = vld [vmem:[#allocation2 + $0x78] sm:$0xff]
    %v106 = vld [vmem:[#allocation2 + $0x80] sm:$0xff]
    %v107 = vld [vmem:[#allocation2 + $0x88] sm:$0xff]
    %v108 = vld [vmem:[#allocation2 + $0x90] sm:$0xff]
    %v109 = vld [vmem:[#allocation2 + $0x98] sm:$0xff]
    %v110 = vld [vmem:[#allocation2 + $0xa0] sm:$0xff]
    %v111 = vld [vmem:[#allocation2 + $0xa8] sm:$0xff]
    %v112 = vld [vmem:[#allocation2 + $0xb0] sm:$0xff]
    %v113 = vld [vmem:[#allocation2 + $0xb8] sm:$0xff]
    %v114 = vld [vmem:[#allocation2 + $0xc0] sm:$0xff]
    %v115 = vld [vmem:[#allocation2 + $0xc8] sm:$0xff]
    %v116 = vld [vmem:[#allocation2 + $0xd0] sm:$0xff]
    %v117 = vld [vmem:[#allocation2 + $0xd8] sm:$0xff]
    %v118 = vld [vmem:[#allocation2 + $0xe0] sm:$0xff]
    %v119 = vld [vmem:[#allocation2 + $0xe8] sm:$0xff]
    %v120 = vld [vmem:[#allocation2 + $0xf0] sm:$0xff]
    %v121 = vld [vmem:[#allocation2 + $0xf8] sm:$0xff]
    %v122 = vld [vmem:[#allocation2 + $0x100] sm:$0xff]
    %v123 = vld [vmem:[#allocation2 + $0x108] sm:$0xff]
    %v124 = vld [vmem:[#allocation2 + $0x110] sm:$0xff]
    %v125 = vld [vmem:[#allocation2 + $0x118] sm:$0xff]
    %v126 = vld [vmem:[#allocation2 + $0x120] sm:$0xff]
    %v127 = vld [vmem:[#allocation2 + $0x128] sm:$0xff]
    %v128 = vld [vmem:[#allocation2 + $0x130] sm:$0xff]
    %v129 = vld [vmem:[#allocation2 + $0x138] sm:$0xff]
    %v130 = vld [vmem:[#allocation2 + $0x140] sm:$0xff]
    %v131 = vld [vmem:[#allocation2 + $0x148] sm:$0xff]
    %v132 = vld [vmem:[#allocation2 + $0x150] sm:$0xff]
    %v133 = vld [vmem:[#allocation2 + $0x158] sm:$0xff]
    %v134 = vld [vmem:[#allocation2 + $0x160] sm:$0xff]
    %v135 = vld [vmem:[#allocation2 + $0x168] sm:$0xff]
    %v136 = vld [vmem:[#allocation2 + $0x170] sm:$0xff]
    %v137 = vld [vmem:[#allocation2 + $0x178] sm:$0xff]
    %v138 = vld [vmem:[#allocation2 + $0x180] sm:$0xff]
    %v139 = vld [vmem:[#allocation2 + $0x188] sm:$0xff]
    %v140 = vld [vmem:[#allocation2 + $0x190] sm:$0xff]
    %v141 = vld [vmem:[#allocation2 + $0x198] sm:$0xff]
    %v142 = vld [vmem:[#allocation2 + $0x1a0] sm:$0xff]
    %v143 = vld [vmem:[#allocation2 + $0x1a8] sm:$0xff]
    %v144 = vld [vmem:[#allocation2 + $0x1b0] sm:$0xff]
    %v145 = vld [vmem:[#allocation2 + $0x1b8] sm:$0xff]
    %v146 = vld [vmem:[#allocation4] sm:$0xff]
    %v147 = vld [vmem:[#allocation4 + $0x8] sm:$0xff]
    %v148 = vld [vmem:[#allocation4 + $0x10] sm:$0xff]
    %v149 = vld [vmem:[#allocation4 + $0x18] sm:$0xff]
    %v150 = vld [vmem:[#allocation4 + $0x20] sm:$0xff]
    %v151 = vld [vmem:[#allocation4 + $0x28] sm:$0xff]
    %v152 = vld [vmem:[#allocation4 + $0x30] sm:$0xff]
    %v153 = vld [vmem:[#allocation4 + $0x38] sm:$0xff]
    %v154 = vld [vmem:[#allocation4 + $0x40] sm:$0xff]
    %v155 = vld [vmem:[#allocation4 + $0x48] sm:$0xff]
    %v156 = vld [vmem:[#allocation4 + $0x50] sm:$0xff]
    %v157 = vld [vmem:[#allocation4 + $0x58] sm:$0xff]
    %v158 = vld [vmem:[#allocation4 + $0x60] sm:$0xff]
    %v159 = vld [vmem:[#allocation4 + $0x68] sm:$0xff]
    %v160 = vld [vmem:[#allocation4 + $0x70] sm:$0xff]
    %v161 = vld [vmem:[#allocation4 + $0x78] sm:$0xff]
    %v162 = vld [vmem:[#allocation4 + $0x80] sm:$0xff]
    %v163 = vld [vmem:[#allocation4 + $0x88] sm:$0xff]
    %v164 = vld [vmem:[#allocation4 + $0x90] sm:$0xff]
    %v165 = vld [vmem:[#allocation4 + $0x98] sm:$0xff]
    %v166 = vld [vmem:[#allocation4 + $0xa0] sm:$0xff]
    %v167 = vld [vmem:[#allocation4 + $0xa8] sm:$0xff]
    %v168 = vld [vmem:[#allocation4 + $0xb0] sm:$0xff]
    %v169 = vld [vmem:[#allocation4 + $0xb8] sm:$0xff]
    %v170 = vld [vmem:[#allocation4 + $0xc0] sm:$0xff]
    %v171 = vld [vmem:[#allocation4 + $0xc8] sm:$0xff]
    %v172 = vld [vmem:[#allocation4 + $0xd0] sm:$0xff]
    %v173 = vld [vmem:[#allocation4 + $0xd8] sm:$0xff]
    %v174 = vld [vmem:[#allocation4 + $0xe0] sm:$0xff]
    %v175 = vld [vmem:[#allocation4 + $0xe8] sm:$0xff]
    %v176 = vld [vmem:[#allocation4 + $0xf0] sm:$0xff]
    %v177 = vld [vmem:[#allocation4 + $0xf8] sm:$0xff]
    %v178 = vld [vmem:[#allocation4 + $0x100] sm:$0xff]
    %v179 = vld [vmem:[#allocation4 + $0x108] sm:$0xff]
    %v180 = vld [vmem:[#allocation4 + $0x110] sm:$0xff]
    %v181 = vld [vmem:[#allocation4 + $0x118] sm:$0xff]
    %v182 = vld [vmem:[#allocation4 + $0x120] sm:$0xff]
    %v183 = vld [vmem:[#allocation4 + $0x128] sm:$0xff]
    %v184 = vld [vmem:[#allocation4 + $0x130] sm:$0xff]
    %v185 = vld [vmem:[#allocation4 + $0x138] sm:$0xff]
    %v186 = vld [vmem:[#allocation4 + $0x140] sm:$0xff]
    %v187 = vld [vmem:[#allocation4 + $0x148] sm:$0xff]
    %v188 = vld [vmem:[#allocation4 + $0x150] sm:$0xff]
    %v189 = vld [vmem:[#allocation4 + $0x158] sm:$0xff]
    %v190 = vld [vmem:[#allocation4 + $0x160] sm:$0xff]
    %v191 = vld [vmem:[#allocation4 + $0x168] sm:$0xff]
    %v192 = vld [vmem:[#allocation4 + $0x170] sm:$0xff]
    %v193 = vld [vmem:[#allocation4 + $0x178] sm:$0xff]
    %v194 = vld [vmem:[#allocation4 + $0x180] sm:$0xff]
    %v195 = vld [vmem:[#allocation4 + $0x188] sm:$0xff]
    %v196 = vld [vmem:[#allocation4 + $0x190] sm:$0xff]
    %v197 = vld [vmem:[#allocation4 + $0x198] sm:$0xff]
    %v198 = vld [vmem:[#allocation4 + $0x1a0] sm:$0xff]
    %v199 = vld [vmem:[#allocation4 + $0x1a8] sm:$0xff]
    %v200 = vld [vmem:[#allocation4 + $0x1b0] sm:$0xff]
    %v201 = vld [vmem:[#allocation4 + $0x1b8] sm:$0xff]
    %v202 = vld [vmem:[#allocation4 + $0x1c0] sm:$0xff]
    %v203 = vld [vmem:[#allocation4 + $0x1c8] sm:$0xff]
    %v204 = vld [vmem:[#allocation4 + $0x1d0] sm:$0xff]
    %v205 = vld [vmem:[#allocation4 + $0x1d8] sm:$0xff]
    %v206 = vld [vmem:[#allocation4 + $0x1e0] sm:$0xff]
    %v207 = vld [vmem:[#allocation4 + $0x1e8] sm:$0xff]
    %v208 = vld [vmem:[#allocation4 + $0x1f0] sm:$0xff]
    %v209 = vld [vmem:[#allocation4 + $0x1f8] sm:$0xff]
    %v210 = vld [vmem:[#allocation4 + $0x200] sm:$0xff]
    %v211 = vld [vmem:[#allocation4 + $0x208] sm:$0xff]
    %v212 = vld [vmem:[#allocation4 + $0x210] sm:$0xff]
    %v213 = vld [vmem:[#allocation4 + $0x218] sm:$0xff]
    %v214 = vld [vmem:[#allocation4 + $0x220] sm:$0xff]
    %v215 = vld [vmem:[#allocation4 + $0x228] sm:$0xff]
    %v216 = vld [vmem:[#allocation4 + $0x230] sm:$0xff]
    %v217 = vld [vmem:[#allocation4 + $0x238] sm:$0xff]
    %v218 = vld [vmem:[#allocation4 + $0x240] sm:$0xff]
    %v219 = vld [vmem:[#allocation4 + $0x248] sm:$0xff]
    %v220 = vld [vmem:[#allocation4 + $0x250] sm:$0xff]
    %v221 = vld [vmem:[#allocation4 + $0x258] sm:$0xff]
    %v222 = vld [vmem:[#allocation4 + $0x260] sm:$0xff]
    %v223 = vld [vmem:[#allocation4 + $0x268] sm:$0xff]
    %v224 = vld [vmem:[#allocation4 + $0x270] sm:$0xff]
    %v225 = vld [vmem:[#allocation4 + $0x278] sm:$0xff]
    %v226 = vld [vmem:[#allocation4 + $0x280] sm:$0xff]
    %v227 = vld [vmem:[#allocation4 + $0x288] sm:$0xff]
    %v228 = vld [vmem:[#allocation4 + $0x290] sm:$0xff]
    %v229 = vld [vmem:[#allocation4 + $0x298] sm:$0xff]
    %v230 = vld [vmem:[#allocation4 + $0x2a0] sm:$0xff]
    %v231 = vld [vmem:[#allocation4 + $0x2a8] sm:$0xff]
    %v232 = vld [vmem:[#allocation4 + $0x2b0] sm:$0xff]
    %v233 = vld [vmem:[#allocation4 + $0x2b8] sm:$0xff]
    %v234 = vld [vmem:[#allocation4 + $0x2c0] sm:$0xff]
    %v235 = vld [vmem:[#allocation4 + $0x2c8] sm:$0xff]
    %v236 = vld [vmem:[#allocation4 + $0x2d0] sm:$0xff]
    %v237 = vld [vmem:[#allocation4 + $0x2d8] sm:$0xff]
    %v238 = vld [vmem:[#allocation4 + $0x2e0] sm:$0xff]
    %v239 = vld [vmem:[#allocation4 + $0x2e8] sm:$0xff]
    %v240 = vld [vmem:[#allocation4 + $0x2f0] sm:$0xff]
    %v241 = vld [vmem:[#allocation4 + $0x2f8] sm:$0xff]
    %v242 = vld [vmem:[#allocation4 + $0x300] sm:$0xff]
    %v243 = vld [vmem:[#allocation4 + $0x308] sm:$0xff]
    %v244 = vld [vmem:[#allocation4 + $0x310] sm:$0xff]
    %v245 = vld [vmem:[#allocation4 + $0x318] sm:$0xff]
    %v246 = vld [vmem:[#allocation4 + $0x320] sm:$0xff]
    %v247 = vld [vmem:[#allocation4 + $0x328] sm:$0xff]
    %v248 = vld [vmem:[#allocation4 + $0x330] sm:$0xff]
    %v249 = vld [vmem:[#allocation4 + $0x338] sm:$0xff]
    %v250 = vld [vmem:[#allocation4 + $0x340] sm:$0xff]
    %v251 = vld [vmem:[#allocation4 + $0x348] sm:$0xff]
    %v252 = vld [vmem:[#allocation4 + $0x350] sm:$0xff]
    %v253 = vld [vmem:[#allocation4 + $0x358] sm:$0xff]
    %v254 = vld [vmem:[#allocation4 + $0x360] sm:$0xff]
    %v255 = vld [vmem:[#allocation4 + $0x368] sm:$0xff]
    %v256 = vld [vmem:[#allocation4 + $0x370] sm:$0xff]
    %v257 = vld [vmem:[#allocation4 + $0x378] sm:$0xff]
    %v258 = vld [vmem:[#allocation4 + $0x380] sm:$0xff]
    %v259 = vld [vmem:[#allocation4 + $0x388] sm:$0xff]
    %v260 = vld [vmem:[#allocation4 + $0x390] sm:$0xff]
    %v261 = vld [vmem:[#allocation4 + $0x398] sm:$0xff]
    %v262 = vld [vmem:[#allocation4 + $0x3a0] sm:$0xff]
    %v263 = vld [vmem:[#allocation4 + $0x3a8] sm:$0xff]
    %v264 = vld [vmem:[#allocation4 + $0x3b0] sm:$0xff]
    %v265 = vld [vmem:[#allocation4 + $0x3b8] sm:$0xff]
    %v266 = vld [vmem:[#allocation4 + $0x3c0] sm:$0xff]
    %v267 = vld [vmem:[#allocation4 + $0x3c8] sm:$0xff]
    %v268 = vld [vmem:[#allocation4 + $0x3d0] sm:$0xff]
    %v269 = vld [vmem:[#allocation4 + $0x3d8] sm:$0xff]
    %v270 = vld [vmem:[#allocation4 + $0x3e0] sm:$0xff]
    %v271 = vld [vmem:[#allocation4 + $0x3e8] sm:$0xff]
    %v272 = vld [vmem:[#allocation4 + $0x3f0] sm:$0xff]
    %v273 = vld [vmem:[#allocation4 + $0x3f8] sm:$0xff]
    %v274 = vld [vmem:[#allocation4 + $0x400] sm:$0xff]
    %v275 = vld [vmem:[#allocation4 + $0x408] sm:$0xff]
    %v276 = vld [vmem:[#allocation4 + $0x410] sm:$0xff]
    %v277 = vld [vmem:[#allocation4 + $0x418] sm:$0xff]
    %v278 = vld [vmem:[#allocation4 + $0x420] sm:$0xff]
    %v279 = vld [vmem:[#allocation4 + $0x428] sm:$0xff]
    %v280 = vld [vmem:[#allocation4 + $0x430] sm:$0xff]
    %v281 = vld [vmem:[#allocation4 + $0x438] sm:$0xff]
    %v282 = vld [vmem:[#allocation4 + $0x440] sm:$0xff]
    %v283 = vld [vmem:[#allocation4 + $0x448] sm:$0xff]
    %v284 = vld [vmem:[#allocation4 + $0x450] sm:$0xff]
    %v285 = vld [vmem:[#allocation4 + $0x458] sm:$0xff]
    %v286 = vld [vmem:[#allocation4 + $0x460] sm:$0xff]
    %v287 = vld [vmem:[#allocation4 + $0x468] sm:$0xff]
    %v288 = vld [vmem:[#allocation4 + $0x470] sm:$0xff]
    %v289 = vld [vmem:[#allocation4 + $0x478] sm:$0xff]
    %v290 = vld [vmem:[#allocation4 + $0x480] sm:$0xff]
    %v291 = vld [vmem:[#allocation4 + $0x488] sm:$0xff]
    %v292 = vld [vmem:[#allocation4 + $0x490] sm:$0xff]
    %v293 = vld [vmem:[#allocation4 + $0x498] sm:$0xff]
    %v294 = vld [vmem:[#allocation4 + $0x4a0] sm:$0xff]
    %v295 = vld [vmem:[#allocation4 + $0x4a8] sm:$0xff]
    %v296 = vld [vmem:[#allocation4 + $0x4b0] sm:$0xff]
    %v297 = vld [vmem:[#allocation4 + $0x4b8] sm:$0xff]
    %v298 = vld [vmem:[#allocation4 + $0x4c0] sm:$0xff]
    %v299 = vld [vmem:[#allocation4 + $0x4c8] sm:$0xff]
    %v300 = vld [vmem:[#allocation4 + $0x4d0] sm:$0xff]
    %v301 = vld [vmem:[#allocation4 + $0x4d8] sm:$0xff]
    %v302 = vld [vmem:[#allocation4 + $0x4e0] sm:$0xff]
    %v303 = vld [vmem:[#allocation4 + $0x4e8] sm:$0xff]
    %v304 = vld [vmem:[#allocation4 + $0x4f0] sm:$0xff]
    %v305 = vld [vmem:[#allocation4 + $0x4f8] sm:$0xff]
    %v306 = vld [vmem:[#allocation4 + $0x500] sm:$0xff]
    %v307 = vld [vmem:[#allocation4 + $0x508] sm:$0xff]
    %v308 = vld [vmem:[#allocation4 + $0x510] sm:$0xff]
    %v309 = vld [vmem:[#allocation4 + $0x518] sm:$0xff]
    %v310 = vld [vmem:[#allocation4 + $0x520] sm:$0xff]
    %v311 = vld [vmem:[#allocation4 + $0x528] sm:$0xff]
    %v312 = vld [vmem:[#allocation4 + $0x530] sm:$0xff]
    %v313 = vld [vmem:[#allocation4 + $0x538] sm:$0xff]
    %v314 = vld [vmem:[#allocation4 + $0x540] sm:$0xff]
    %v315 = vld [vmem:[#allocation4 + $0x548] sm:$0xff]
    %v316 = vld [vmem:[#allocation4 + $0x550] sm:$0xff]
    %v317 = vld [vmem:[#allocation4 + $0x558] sm:$0xff]
    %v318 = vld [vmem:[#allocation4 + $0x560] sm:$0xff]
    %v319 = vld [vmem:[#allocation4 + $0x568] sm:$0xff]
    %v320 = vld [vmem:[#allocation4 + $0x570] sm:$0xff]
    %v321 = vld [vmem:[#allocation4 + $0x578] sm:$0xff]
    %v322 = vld [vmem:[#allocation4 + $0x580] sm:$0xff]
    %v323 = vld [vmem:[#allocation4 + $0x588] sm:$0xff]
    %v324 = vld [vmem:[#allocation4 + $0x590] sm:$0xff]
    %v325 = vld [vmem:[#allocation4 + $0x598] sm:$0xff]
    %v326 = vld [vmem:[#allocation4 + $0x5a0] sm:$0xff]
    %v327 = vld [vmem:[#allocation4 + $0x5a8] sm:$0xff]
    %v328 = vld [vmem:[#allocation4 + $0x5b0] sm:$0xff]
    %v329 = vld [vmem:[#allocation4 + $0x5b8] sm:$0xff]
    %v330 = vld [vmem:[#allocation4 + $0x5c0] sm:$0xff]
    %v331 = vld [vmem:[#allocation4 + $0x5c8] sm:$0xff]
    %v332 = vld [vmem:[#allocation4 + $0x5d0] sm:$0xff]
    %v333 = vld [vmem:[#allocation4 + $0x5d8] sm:$0xff]
    %v334 = vld [vmem:[#allocation4 + $0x5e0] sm:$0xff]
    %v335 = vld [vmem:[#allocation4 + $0x5e8] sm:$0xff]
    %v336 = vld [vmem:[#allocation4 + $0x5f0] sm:$0xff]
    %v337 = vld [vmem:[#allocation4 + $0x5f8] sm:$0xff]
    %v338 = vld [vmem:[#allocation4 + $0x600] sm:$0xff]
    %v339 = vld [vmem:[#allocation4 + $0x608] sm:$0xff]
    %v340 = vld [vmem:[#allocation4 + $0x610] sm:$0xff]
    %v341 = vld [vmem:[#allocation4 + $0x618] sm:$0xff]
    %v342 = vld [vmem:[#allocation4 + $0x620] sm:$0xff]
    %v343 = vld [vmem:[#allocation4 + $0x628] sm:$0xff]
    %v344 = vld [vmem:[#allocation4 + $0x630] sm:$0xff]
    %v345 = vld [vmem:[#allocation4 + $0x638] sm:$0xff]
    %v346 = vld [vmem:[#allocation4 + $0x640] sm:$0xff]
    %v347 = vld [vmem:[#allocation4 + $0x648] sm:$0xff]
    %v348 = vld [vmem:[#allocation4 + $0x650] sm:$0xff]
    %v349 = vld [vmem:[#allocation4 + $0x658] sm:$0xff]
    %v350 = vld [vmem:[#allocation4 + $0x660] sm:$0xff]
    %v351 = vld [vmem:[#allocation4 + $0x668] sm:$0xff]
    %v352 = vld [vmem:[#allocation4 + $0x670] sm:$0xff]
    %v353 = vld [vmem:[#allocation4 + $0x678] sm:$0xff]
    %v354 = vld [vmem:[#allocation4 + $0x680] sm:$0xff]
    %v355 = vld [vmem:[#allocation4 + $0x688] sm:$0xff]
    %v356 = vld [vmem:[#allocation4 + $0x690] sm:$0xff]
    %v357 = vld [vmem:[#allocation4 + $0x698] sm:$0xff]
    %v358 = vld [vmem:[#allocation4 + $0x6a0] sm:$0xff]
    %v359 = vld [vmem:[#allocation4 + $0x6a8] sm:$0xff]
    %v360 = vld [vmem:[#allocation4 + $0x6b0] sm:$0xff]
    %v361 = vld [vmem:[#allocation4 + $0x6b8] sm:$0xff]
    %v362 = vld [vmem:[#allocation4 + $0x6c0] sm:$0xff]
    %v363 = vld [vmem:[#allocation4 + $0x6c8] sm:$0xff]
    %v364 = vld [vmem:[#allocation4 + $0x6d0] sm:$0xff]
    %v365 = vld [vmem:[#allocation4 + $0x6d8] sm:$0xff]
    %v366 = vld [vmem:[#allocation4 + $0x6e0] sm:$0xff]
    %v367 = vld [vmem:[#allocation4 + $0x6e8] sm:$0xff]
    %v368 = vld [vmem:[#allocation4 + $0x6f0] sm:$0xff]
    %v369 = vld [vmem:[#allocation4 + $0x6f8] sm:$0xff]
    %v370 = vld [vmem:[#allocation4 + $0x700] sm:$0xff]
    %v371 = vld [vmem:[#allocation4 + $0x708] sm:$0xff]
    %v372 = vld [vmem:[#allocation4 + $0x710] sm:$0xff]
    %v373 = vld [vmem:[#allocation4 + $0x718] sm:$0xff]
    %v374 = vld [vmem:[#allocation4 + $0x720] sm:$0xff]
    %v375 = vld [vmem:[#allocation4 + $0x728] sm:$0xff]
    %v376 = vld [vmem:[#allocation4 + $0x730] sm:$0xff]
    %v377 = vld [vmem:[#allocation4 + $0x738] sm:$0xff]
    %v378 = vld [vmem:[#allocation4 + $0x740] sm:$0xff]
    %v379 = vld [vmem:[#allocation4 + $0x748] sm:$0xff]
    %v380 = vld [vmem:[#allocation4 + $0x750] sm:$0xff]
    %v381 = vld [vmem:[#allocation4 + $0x758] sm:$0xff]
    %v382 = vld [vmem:[#allocation4 + $0x760] sm:$0xff]
    %v383 = vld [vmem:[#allocation4 + $0x768] sm:$0xff]
    %v384 = vld [vmem:[#allocation4 + $0x770] sm:$0xff]
    %v385 = vld [vmem:[#allocation4 + $0x778] sm:$0xff]
    %v386 = vld [vmem:[#allocation4 + $0x780] sm:$0xff]
    %v387 = vld [vmem:[#allocation4 + $0x788] sm:$0xff]
    %v388 = vld [vmem:[#allocation4 + $0x790] sm:$0xff]
    %v389 = vld [vmem:[#allocation4 + $0x798] sm:$0xff]
    %v390 = vld [vmem:[#allocation4 + $0x7a0] sm:$0xff]
    %v391 = vld [vmem:[#allocation4 + $0x7a8] sm:$0xff]
    %v392 = vld [vmem:[#allocation4 + $0x7b0] sm:$0xff]
    %v393 = vld [vmem:[#allocation4 + $0x7b8] sm:$0xff]
    %v394 = vld [vmem:[#allocation4 + $0x7c0] sm:$0xff]
    %v395 = vld [vmem:[#allocation4 + $0x7c8] sm:$0xff]
    %v396 = vld [vmem:[#allocation4 + $0x7d0] sm:$0xff]
    %v397 = vld [vmem:[#allocation4 + $0x7d8] sm:$0xff]
    %v398 = vld [vmem:[#allocation4 + $0x7e0] sm:$0xff]
    %v399 = vld [vmem:[#allocation4 + $0x7e8] sm:$0xff]
    %v400 = vld [vmem:[#allocation4 + $0x7f0] sm:$0xff]
    %v401 = vld [vmem:[#allocation4 + $0x7f8] sm:$0xff]
    %v402 = vld [vmem:[#allocation4 + $0x800] sm:$0xff]
    %v403 = vld [vmem:[#allocation4 + $0x808] sm:$0xff]
    %v404 = vld [vmem:[#allocation4 + $0x810] sm:$0xff]
    %v405 = vld [vmem:[#allocation4 + $0x818] sm:$0xff]
    %v406 = vld [vmem:[#allocation4 + $0x820] sm:$0xff]
    %v407 = vld [vmem:[#allocation4 + $0x828] sm:$0xff]
    %v408 = vld [vmem:[#allocation4 + $0x830] sm:$0xff]
    %v409 = vld [vmem:[#allocation4 + $0x838] sm:$0xff]
    %v410 = vld [vmem:[#allocation4 + $0x840] sm:$0xff]
    %v411 = vld [vmem:[#allocation4 + $0x848] sm:$0xff]
    %v412 = vld [vmem:[#allocation4 + $0x850] sm:$0xff]
    %v413 = vld [vmem:[#allocation4 + $0x858] sm:$0xff]
    %v414 = vld [vmem:[#allocation4 + $0x860] sm:$0xff]
    %v415 = vld [vmem:[#allocation4 + $0x868] sm:$0xff]
    %v416 = vld [vmem:[#allocation4 + $0x870] sm:$0xff]
    %v417 = vld [vmem:[#allocation4 + $0x878] sm:$0xff]
    %v418 = vld [vmem:[#allocation4 + $0x880] sm:$0xff]
    %v419 = vld [vmem:[#allocation4 + $0x888] sm:$0xff]
    %v420 = vld [vmem:[#allocation4 + $0x890] sm:$0xff]
    %v421 = vld [vmem:[#allocation4 + $0x898] sm:$0xff]
    %v422 = vld [vmem:[#allocation4 + $0x8a0] sm:$0xff]
    %v423 = vld [vmem:[#allocation4 + $0x8a8] sm:$0xff]
    %v424 = vld [vmem:[#allocation4 + $0x8b0] sm:$0xff]
    %v425 = vld [vmem:[#allocation4 + $0x8b8] sm:$0xff]
    %v426 = vld [vmem:[#allocation4 + $0x8c0] sm:$0xff]
    %v427 = vld [vmem:[#allocation4 + $0x8c8] sm:$0xff]
    %v428 = vld [vmem:[#allocation4 + $0x8d0] sm:$0xff]
    %v429 = vld [vmem:[#allocation4 + $0x8d8] sm:$0xff]
    %v430 = vld [vmem:[#allocation4 + $0x8e0] sm:$0xff]
    %v431 = vld [vmem:[#allocation4 + $0x8e8] sm:$0xff]
    %v432 = vld [vmem:[#allocation4 + $0x8f0] sm:$0xff]
    %v433 = vld [vmem:[#allocation4 + $0x8f8] sm:$0xff]
    %v434 = vld [vmem:[#allocation4 + $0x900] sm:$0xff]
    %v435 = vld [vmem:[#allocation4 + $0x908] sm:$0xff]
    %v436 = vld [vmem:[#allocation4 + $0x910] sm:$0xff]
    %v437 = vld [vmem:[#allocation4 + $0x918] sm:$0xff]
    %v438 = vld [vmem:[#allocation4 + $0x920] sm:$0xff]
    %v439 = vld [vmem:[#allocation4 + $0x928] sm:$0xff]
    %v440 = vld [vmem:[#allocation4 + $0x930] sm:$0xff]
    %v441 = vld [vmem:[#allocation4 + $0x938] sm:$0xff]
    %v442 = vld [vmem:[#allocation4 + $0x940] sm:$0xff]
    %v443 = vld [vmem:[#allocation4 + $0x948] sm:$0xff]
    %v444 = vld [vmem:[#allocation4 + $0x950] sm:$0xff]
    %v445 = vld [vmem:[#allocation4 + $0x958] sm:$0xff]
    %v446 = vld [vmem:[#allocation4 + $0x960] sm:$0xff]
    %v447 = vld [vmem:[#allocation4 + $0x968] sm:$0xff]
    %v448 = vld [vmem:[#allocation4 + $0x970] sm:$0xff]
    %v449 = vld [vmem:[#allocation4 + $0x978] sm:$0xff]
    %v450 = vld [vmem:[#allocation4 + $0x980] sm:$0xff]
    %v451 = vld [vmem:[#allocation4 + $0x988] sm:$0xff]
    %v452 = vld [vmem:[#allocation4 + $0x990] sm:$0xff]
    %v453 = vld [vmem:[#allocation4 + $0x998] sm:$0xff]
    %v454 = vld [vmem:[#allocation4 + $0x9a0] sm:$0xff]
    %v455 = vld [vmem:[#allocation4 + $0x9a8] sm:$0xff]
    %v456 = vld [vmem:[#allocation4 + $0x9b0] sm:$0xff]
    %v457 = vld [vmem:[#allocation4 + $0x9b8] sm:$0xff]
    %v458 = vld [vmem:[#allocation4 + $0x9c0] sm:$0xff]
    %v459 = vld [vmem:[#allocation4 + $0x9c8] sm:$0xff]
    %v460 = vld [vmem:[#allocation4 + $0x9d0] sm:$0xff]
    %v461 = vld [vmem:[#allocation4 + $0x9d8] sm:$0xff]
    %v462 = vld [vmem:[#allocation4 + $0x9e0] sm:$0xff]
    %v463 = vld [vmem:[#allocation4 + $0x9e8] sm:$0xff]
    %v464 = vld [vmem:[#allocation4 + $0x9f0] sm:$0xff]
    %v465 = vld [vmem:[#allocation4 + $0x9f8] sm:$0xff]
    %v466 = vld [vmem:[#allocation4 + $0xa00] sm:$0xff]
    %v467 = vld [vmem:[#allocation4 + $0xa08] sm:$0xff]
    %v468 = vld [vmem:[#allocation4 + $0xa10] sm:$0xff]
    %v469 = vld [vmem:[#allocation4 + $0xa18] sm:$0xff]
    %v470 = vld [vmem:[#allocation4 + $0xa20] sm:$0xff]
    %v471 = vld [vmem:[#allocation4 + $0xa28] sm:$0xff]
    %v472 = vld [vmem:[#allocation4 + $0xa30] sm:$0xff]
    %v473 = vld [vmem:[#allocation4 + $0xa38] sm:$0xff]
    %v474 = vld [vmem:[#allocation4 + $0xa40] sm:$0xff]
    %v475 = vld [vmem:[#allocation4 + $0xa48] sm:$0xff]
    %v476 = vld [vmem:[#allocation4 + $0xa50] sm:$0xff]
    %v477 = vld [vmem:[#allocation4 + $0xa58] sm:$0xff]
    %v478 = vld [vmem:[#allocation4 + $0xa60] sm:$0xff]
    %v479 = vld [vmem:[#allocation4 + $0xa68] sm:$0xff]
    %v480 = vld [vmem:[#allocation4 + $0xa70] sm:$0xff]
    %v481 = vld [vmem:[#allocation4 + $0xa78] sm:$0xff]
    %v482 = vld [vmem:[#allocation4 + $0xa80] sm:$0xff]
    %v483 = vld [vmem:[#allocation4 + $0xa88] sm:$0xff]
    %v484 = vld [vmem:[#allocation4 + $0xa90] sm:$0xff]
    %v485 = vld [vmem:[#allocation4 + $0xa98] sm:$0xff]
    %v486 = vld [vmem:[#allocation4 + $0xaa0] sm:$0xff]
    %v487 = vld [vmem:[#allocation4 + $0xaa8] sm:$0xff]
    %v488 = vld [vmem:[#allocation4 + $0xab0] sm:$0xff]
    %v489 = vld [vmem:[#allocation4 + $0xab8] sm:$0xff]
    %v490 = vld [vmem:[#allocation4 + $0xac0] sm:$0xff]
    %v491 = vld [vmem:[#allocation4 + $0xac8] sm:$0xff]
    %v492 = vld [vmem:[#allocation4 + $0xad0] sm:$0xff]
    %v493 = vld [vmem:[#allocation4 + $0xad8] sm:$0xff]
    %v494 = vld [vmem:[#allocation4 + $0xae0] sm:$0xff]
    %v495 = vld [vmem:[#allocation4 + $0xae8] sm:$0xff]
    %v496 = vld [vmem:[#allocation4 + $0xaf0] sm:$0xff]
    %v497 = vld [vmem:[#allocation4 + $0xaf8] sm:$0xff]
    %v498 = vld [vmem:[#allocation4 + $0xb00] sm:$0xff]
    %v499 = vld [vmem:[#allocation4 + $0xb08] sm:$0xff]
    %v500 = vld [vmem:[#allocation4 + $0xb10] sm:$0xff]
    %v501 = vld [vmem:[#allocation4 + $0xb18] sm:$0xff]
    %v502 = vld [vmem:[#allocation4 + $0xb20] sm:$0xff]
    %v503 = vld [vmem:[#allocation4 + $0xb28] sm:$0xff]
    %v504 = vld [vmem:[#allocation4 + $0xb30] sm:$0xff]
    %v505 = vld [vmem:[#allocation4 + $0xb38] sm:$0xff]
    %v506 = vld [vmem:[#allocation4 + $0xb40] sm:$0xff]
    %v507 = vld [vmem:[#allocation4 + $0xb48] sm:$0xff]
    %v508 = vld [vmem:[#allocation4 + $0xb50] sm:$0xff]
    %v509 = vld [vmem:[#allocation4 + $0xb58] sm:$0xff]
    %v510 = vld [vmem:[#allocation4 + $0xb60] sm:$0xff]
    %v511 = vld [vmem:[#allocation4 + $0xb68] sm:$0xff]
    %v512 = vld [vmem:[#allocation4 + $0xb70] sm:$0xff]
    %v513 = vld [vmem:[#allocation4 + $0xb78] sm:$0xff]
    %v514 = vld [vmem:[#allocation4 + $0xb80] sm:$0xff]
    %v515 = vld [vmem:[#allocation4 + $0xb88] sm:$0xff]
    %v516 = vld [vmem:[#allocation4 + $0xb90] sm:$0xff]
    %v517 = vld [vmem:[#allocation4 + $0xb98] sm:$0xff]
    %v518 = vld [vmem:[#allocation4 + $0xba0] sm:$0xff]
    %v519 = vld [vmem:[#allocation4 + $0xba8] sm:$0xff]
    %v520 = vld [vmem:[#allocation4 + $0xbb0] sm:$0xff]
    %v521 = vld [vmem:[#allocation4 + $0xbb8] sm:$0xff]
    %v522 = vld [vmem:[#allocation4 + $0xbc0] sm:$0xff]
    %v523 = vld [vmem:[#allocation4 + $0xbc8] sm:$0xff]
    %v524 = vld [vmem:[#allocation4 + $0xbd0] sm:$0xff]
    %v525 = vld [vmem:[#allocation4 + $0xbd8] sm:$0xff]
    %v526 = vld [vmem:[#allocation4 + $0xbe0] sm:$0xff]
    %v527 = vld [vmem:[#allocation4 + $0xbe8] sm:$0xff]
    %v528 = vld [vmem:[#allocation4 + $0xbf0] sm:$0xff]
    %v529 = vld [vmem:[#allocation4 + $0xbf8] sm:$0xff]
    %v530 = vld [vmem:[#allocation4 + $0xc00] sm:$0xff]
    %v531 = vld [vmem:[#allocation4 + $0xc08] sm:$0xff]
    %v532 = vld [vmem:[#allocation4 + $0xc10] sm:$0xff]
    %v533 = vld [vmem:[#allocation4 + $0xc18] sm:$0xff]
    %v534 = vld [vmem:[#allocation4 + $0xc20] sm:$0xff]
    %v535 = vld [vmem:[#allocation4 + $0xc28] sm:$0xff]
    %v536 = vld [vmem:[#allocation4 + $0xc30] sm:$0xff]
    %v537 = vld [vmem:[#allocation4 + $0xc38] sm:$0xff]
    %v538 = vld [vmem:[#allocation6] sm:$0xf]
    %v540 = vlaneseq
    %v541 = vshrl.u32 %v540, 7
    %v542 = vsub.s32 0, %v541
    %v543 = vrot.slane %v538, %v542
    %v544 = vlaneseq
    %v545 = vshrl.u32 %v544, 7
    %v546 = vsub.s32 1, %v545
    %v547 = vrot.slane %v538, %v546
    %v548 = vlaneseq
    %v549 = vshrl.u32 %v548, 7
    %v550 = vsub.s32 2, %v549
    %v551 = vrot.slane %v538, %v550
    %v552 = vlaneseq
    %v553 = vshrl.u32 %v552, 7
    %v554 = vsub.s32 3, %v553
    %v555 = vrot.slane %v538, %v554
    %vm560 = vcmask 130048
    %v562 = vsel %vm560, %v96, 0
    %v565 = vsel %vm560, %v103, 0
    %v568 = vsel %vm560, %v110, 0
    %v571 = vsel %vm560, %v117, 0
    %v574 = vsel %vm560, %v124, 0
    %v577 = vsel %vm560, %v131, 0
    %v580 = vsel %vm560, %v138, 0
    %v583 = vsel %vm560, %v145, 0
    %585 = vmatprep.subr.mxu0 %v147
    %586 = vmatpush1.msra.mxu0 %v146
    %587 = vmatprep.subr.mxu0 %v151
    %588 = vmatpush1.msra.mxu0 %v150
    %589 = vmatprep.subr.mxu0 %v155
    %590 = vmatpush1.msra.mxu0 %v154
    %591 = vmatprep.subr.mxu0 %v159
    %592 = vmatpush1.msra.mxu0 %v158
    %593 = vmatprep.subr.mxu0 %v163
    %594 = vmatpush1.msra.mxu0 %v162
    %595 = vmatprep.subr.mxu0 %v167
    %596 = vmatpush1.msra.mxu0 %v166
    %597 = vmatprep.subr.mxu0 %v171
    %598 = vmatpush1.msra.mxu0 %v170
    %599 = vmatprep.subr.mxu0 %v175
    %600 = vmatpush1.msra.mxu0 %v174
    %601 = vmatprep.subr.mxu0 %v179
    %602 = vmatpush1.msra.mxu0 %v178
    %603 = vmatprep.subr.mxu0 %v183
    %604 = vmatpush1.msra.mxu0 %v182
    %605 = vmatprep.subr.mxu0 %v187
    %606 = vmatpush1.msra.mxu0 %v186
    %607 = vmatprep.subr.mxu0 %v191
    %608 = vmatpush1.msra.mxu0 %v190
    %609 = vmatprep.subr.mxu0 %v195
    %610 = vmatpush1.msra.mxu0 %v194
    %611 = vmatprep.subr.mxu0 %v199
    %612 = vmatpush1.msra.mxu0 %v198
    %613 = vmatprep.subr.mxu0 %v203
    %614 = vmatpush1.msra.mxu0 %v202
    %615 = vmatprep.subr.mxu0 %v207
    %616 = vmatpush1.msra.mxu0 %v206
    %617 = vmatprep.subr.mxu0 %v211
    %618 = vmatpush1.msra.mxu0 %v210
    %619 = vmatprep.subr.mxu0 %v215
    %620 = vmatpush1.msra.mxu0 %v214
    %621 = vmatprep.subr.mxu0 %v219
    %622 = vmatpush1.msra.mxu0 %v218
    %623 = vmatprep.subr.mxu0 %v223
    %624 = vmatpush1.msra.mxu0 %v222
    %625 = vmatprep.subr.mxu0 %v227
    %626 = vmatpush1.msra.mxu0 %v226
    %627 = vmatprep.subr.mxu0 %v231
    %628 = vmatpush1.msra.mxu0 %v230
    %629 = vmatprep.subr.mxu0 %v235
    %630 = vmatpush1.msra.mxu0 %v234
    %631 = vmatprep.subr.mxu0 %v239
    %632 = vmatpush1.msra.mxu0 %v238
    %633 = vmatprep.subr.mxu0 %v243
    %634 = vmatpush1.msra.mxu0 %v242
    %635 = vmatprep.subr.mxu0 %v247
    %636 = vmatpush1.msra.mxu0 %v246
    %637 = vmatprep.subr.mxu0 %v251
    %638 = vmatpush1.msra.mxu0 %v250
    %639 = vmatprep.subr.mxu0 %v255
    %640 = vmatpush1.msra.mxu0 %v254
    %641 = vmatprep.subr.mxu0 %v259
    %642 = vmatpush1.msra.mxu0 %v258
    %643 = vmatprep.subr.mxu0 %v263
    %644 = vmatpush1.msra.mxu0 %v262
    %645 = vmatprep.subr.mxu0 %v267
    %646 = vmatpush1.msra.mxu0 %v266
    %647 = vmatprep.subr.mxu0 %v271
    %648 = vmatpush1.msra.mxu0 %v270
    %649 = vmatprep.mubr.f32.mxu0 %v91
    %650 = vmatmul.mubr.f32.gmra.mrb[0].mxu0 %v90
    %v651 = vpop.f32.mrb[0].mxu0
    %v652 = vadd.f32 %v543, %v651
    %v653 = vpop.f32.mrb[0].mxu0
    %v654 = vadd.f32 %v547, %v653
    %655 = vmatprep.mubr.f32.mxu0 %v98
    %656 = vmatmul.mubr.f32.gmra.mrb[0].mxu0 %v97
    %v657 = vpop.f32.mrb[0].mxu0
    %v658 = vadd.f32 %v543, %v657
    %v659 = vpop.f32.mrb[0].mxu0
    %v660 = vadd.f32 %v547, %v659
    %661 = vmatprep.mubr.f32.mxu0 %v105
    %662 = vmatmul.mubr.f32.gmra.mrb[0].mxu0 %v104
    %v663 = vpop.f32.mrb[0].mxu0
    %v664 = vadd.f32 %v543, %v663
    %v665 = vpop.f32.mrb[0].mxu0
    %v666 = vadd.f32 %v547, %v665
    %667 = vmatprep.mubr.f32.mxu0 %v112
    %668 = vmatmul.mubr.f32.gmra.mrb[0].mxu0 %v111
    %v669 = vpop.f32.mrb[0].mxu0
    %v670 = vadd.f32 %v543, %v669
    %v671 = vpop.f32.mrb[0].mxu0
    %v672 = vadd.f32 %v547, %v671
    %673 = vmatprep.mubr.f32.mxu0 %v119
    %674 = vmatmul.mubr.f32.gmra.mrb[0].mxu0 %v118
    %v675 = vpop.f32.mrb[0].mxu0
    %v676 = vadd.f32 %v543, %v675
    %v677 = vpop.f32.mrb[0].mxu0
    %v678 = vadd.f32 %v547, %v677
    %679 = vmatprep.mubr.f32.mxu0 %v126
    %680 = vmatmul.mubr.f32.gmra.mrb[0].mxu0 %v125
    %v681 = vpop.f32.mrb[0].mxu0
    %v682 = vadd.f32 %v543, %v681
    %v683 = vpop.f32.mrb[0].mxu0
    %v684 = vadd.f32 %v547, %v683
    %685 = vmatprep.mubr.f32.mxu0 %v133
    %686 = vmatmul.mubr.f32.gmra.mrb[0].mxu0 %v132
    %v687 = vpop.f32.mrb[0].mxu0
    %v688 = vadd.f32 %v543, %v687
    %v689 = vpop.f32.mrb[0].mxu0
    %v690 = vadd.f32 %v547, %v689
    %691 = vmatprep.mubr.f32.mxu0 %v140
    %692 = vmatmul.mubr.f32.gmra.mrb[0].mxu0 %v139
    %v693 = vpop.f32.mrb[0].mxu0
    %v694 = vadd.f32 %v543, %v693
    %v695 = vpop.f32.mrb[0].mxu0
    %v696 = vadd.f32 %v547, %v695
    %697 = vdwg.mxu0
    %698 = vmatprep.subr.mxu0 %v275
    %699 = vmatpush1.msra.mxu0 %v274
    %700 = vmatprep.subr.mxu0 %v279
    %701 = vmatpush1.msra.mxu0 %v278
    %702 = vmatprep.subr.mxu0 %v283
    %703 = vmatpush1.msra.mxu0 %v282
    %704 = vmatprep.subr.mxu0 %v287
    %705 = vmatpush1.msra.mxu0 %v286
    %706 = vmatprep.subr.mxu0 %v291
    %707 = vmatpush1.msra.mxu0 %v290
    %708 = vmatprep.subr.mxu0 %v295
    %709 = vmatpush1.msra.mxu0 %v294
    %710 = vmatprep.subr.mxu0 %v299
    %711 = vmatpush1.msra.mxu0 %v298
    %712 = vmatprep.subr.mxu0 %v303
    %713 = vmatpush1.msra.mxu0 %v302
    %714 = vmatprep.subr.mxu0 %v307
    %715 = vmatpush1.msra.mxu0 %v306
    %716 = vmatprep.subr.mxu0 %v311
    %717 = vmatpush1.msra.mxu0 %v310
    %718 = vmatprep.subr.mxu0 %v315
    %719 = vmatpush1.msra.mxu0 %v314
    %720 = vmatprep.subr.mxu0 %v319
    %721 = vmatpush1.msra.mxu0 %v318
    %722 = vmatprep.subr.mxu0 %v323
    %723 = vmatpush1.msra.mxu0 %v322
    %724 = vmatprep.subr.mxu0 %v327
    %725 = vmatpush1.msra.mxu0 %v326
    %726 = vmatprep.subr.mxu0 %v331
    %727 = vmatpush1.msra.mxu0 %v330
    %728 = vmatprep.subr.mxu0 %v335
    %729 = vmatpush1.msra.mxu0 %v334
    %730 = vmatprep.subr.mxu0 %v339
    %731 = vmatpush1.msra.mxu0 %v338
    %732 = vmatprep.subr.mxu0 %v343
    %733 = vmatpush1.msra.mxu0 %v342
    %734 = vmatprep.subr.mxu0 %v347
    %735 = vmatpush1.msra.mxu0 %v346
    %736 = vmatprep.subr.mxu0 %v351
    %737 = vmatpush1.msra.mxu0 %v350
    %738 = vmatprep.subr.mxu0 %v355
    %739 = vmatpush1.msra.mxu0 %v354
    %740 = vmatprep.subr.mxu0 %v359
    %741 = vmatpush1.msra.mxu0 %v358
    %742 = vmatprep.subr.mxu0 %v363
    %743 = vmatpush1.msra.mxu0 %v362
    %744 = vmatprep.subr.mxu0 %v367
    %745 = vmatpush1.msra.mxu0 %v366
    %746 = vmatprep.subr.mxu0 %v371
    %747 = vmatpush1.msra.mxu0 %v370
    %748 = vmatprep.subr.mxu0 %v375
    %749 = vmatpush1.msra.mxu0 %v374
    %750 = vmatprep.subr.mxu0 %v379
    %751 = vmatpush1.msra.mxu0 %v378
    %752 = vmatprep.subr.mxu0 %v383
    %753 = vmatpush1.msra.mxu0 %v382
    %754 = vmatprep.subr.mxu0 %v387
    %755 = vmatpush1.msra.mxu0 %v386
    %756 = vmatprep.subr.mxu0 %v391
    %757 = vmatpush1.msra.mxu0 %v390
    %758 = vmatprep.subr.mxu0 %v395
    %759 = vmatpush1.msra.mxu0 %v394
    %760 = vmatprep.subr.mxu0 %v399
    %761 = vmatpush1.msra.mxu0 %v398
    %762 = vmatprep.mubr.f32.mxu0 %v93
    %763 = vmatmul.mubr.f32.gmra.mrb[0].mxu0 %v92
    %v764 = vpop.f32.mrb[0].mxu0
    %v765 = vadd.f32 %v652, %v764
    %v766 = vpop.f32.mrb[0].mxu0
    %v767 = vadd.f32 %v654, %v766
    %768 = vmatprep.mubr.f32.mxu0 %v100
    %769 = vmatmul.mubr.f32.gmra.mrb[0].mxu0 %v99
    %v770 = vpop.f32.mrb[0].mxu0
    %v771 = vadd.f32 %v658, %v770
    %v772 = vpop.f32.mrb[0].mxu0
    %v773 = vadd.f32 %v660, %v772
    %774 = vmatprep.mubr.f32.mxu0 %v107
    %775 = vmatmul.mubr.f32.gmra.mrb[0].mxu0 %v106
    %v776 = vpop.f32.mrb[0].mxu0
    %v777 = vadd.f32 %v664, %v776
    %v778 = vpop.f32.mrb[0].mxu0
    %v779 = vadd.f32 %v666, %v778
    %780 = vmatprep.mubr.f32.mxu0 %v114
    %781 = vmatmul.mubr.f32.gmra.mrb[0].mxu0 %v113
    %v782 = vpop.f32.mrb[0].mxu0
    %v783 = vadd.f32 %v670, %v782
    %v784 = vpop.f32.mrb[0].mxu0
    %v785 = vadd.f32 %v672, %v784
    %786 = vmatprep.mubr.f32.mxu0 %v121
    %787 = vmatmul.mubr.f32.gmra.mrb[0].mxu0 %v120
    %v788 = vpop.f32.mrb[0].mxu0
    %v789 = vadd.f32 %v676, %v788
    %v790 = vpop.f32.mrb[0].mxu0
    %v791 = vadd.f32 %v678, %v790
    %792 = vmatprep.mubr.f32.mxu0 %v128
    %793 = vmatmul.mubr.f32.gmra.mrb[0].mxu0 %v127
    %v794 = vpop.f32.mrb[0].mxu0
    %v795 = vadd.f32 %v682, %v794
    %v796 = vpop.f32.mrb[0].mxu0
    %v797 = vadd.f32 %v684, %v796
    %798 = vmatprep.mubr.f32.mxu0 %v135
    %799 = vmatmul.mubr.f32.gmra.mrb[0].mxu0 %v134
    %v800 = vpop.f32.mrb[0].mxu0
    %v801 = vadd.f32 %v688, %v800
    %v802 = vpop.f32.mrb[0].mxu0
    %v803 = vadd.f32 %v690, %v802
    %804 = vmatprep.mubr.f32.mxu0 %v142
    %805 = vmatmul.mubr.f32.gmra.mrb[0].mxu0 %v141
    %v806 = vpop.f32.mrb[0].mxu0
    %v807 = vadd.f32 %v694, %v806
    %v808 = vpop.f32.mrb[0].mxu0
    %v809 = vadd.f32 %v696, %v808
    %810 = vdwg.mxu0
    %811 = vmatprep.subr.mxu0 %v403
    %812 = vmatpush1.msra.mxu0 %v402
    %813 = vmatprep.subr.mxu0 %v407
    %814 = vmatpush1.msra.mxu0 %v406
    %815 = vmatprep.subr.mxu0 %v411
    %816 = vmatpush1.msra.mxu0 %v410
    %817 = vmatprep.subr.mxu0 %v415
    %818 = vmatpush1.msra.mxu0 %v414
    %819 = vmatprep.subr.mxu0 %v419
    %820 = vmatpush1.msra.mxu0 %v418
    %821 = vmatprep.subr.mxu0 %v423
    %822 = vmatpush1.msra.mxu0 %v422
    %823 = vmatprep.subr.mxu0 %v427
    %824 = vmatpush1.msra.mxu0 %v426
    %825 = vmatprep.subr.mxu0 %v431
    %826 = vmatpush1.msra.mxu0 %v430
    %827 = vmatprep.subr.mxu0 %v435
    %828 = vmatpush1.msra.mxu0 %v434
    %829 = vmatprep.subr.mxu0 %v439
    %830 = vmatpush1.msra.mxu0 %v438
    %831 = vmatprep.subr.mxu0 %v443
    %832 = vmatpush1.msra.mxu0 %v442
    %833 = vmatprep.subr.mxu0 %v447
    %834 = vmatpush1.msra.mxu0 %v446
    %835 = vmatprep.subr.mxu0 %v451
    %836 = vmatpush1.msra.mxu0 %v450
    %837 = vmatprep.subr.mxu0 %v455
    %838 = vmatpush1.msra.mxu0 %v454
    %839 = vmatprep.subr.mxu0 %v459
    %840 = vmatpush1.msra.mxu0 %v458
    %841 = vmatprep.subr.mxu0 %v463
    %842 = vmatpush1.msra.mxu0 %v462
    %843 = vmatprep.subr.mxu0 %v467
    %844 = vmatpush1.msra.mxu0 %v466
    %845 = vmatprep.subr.mxu0 %v471
    %846 = vmatpush1.msra.mxu0 %v470
    %847 = vmatprep.subr.mxu0 %v475
    %848 = vmatpush1.msra.mxu0 %v474
    %849 = vmatprep.subr.mxu0 %v479
    %850 = vmatpush1.msra.mxu0 %v478
    %851 = vmatprep.subr.mxu0 %v483
    %852 = vmatpush1.msra.mxu0 %v482
    %853 = vmatprep.subr.mxu0 %v487
    %854 = vmatpush1.msra.mxu0 %v486
    %855 = vmatprep.subr.mxu0 %v491
    %856 = vmatpush1.msra.mxu0 %v490
    %857 = vmatprep.subr.mxu0 %v495
    %858 = vmatpush1.msra.mxu0 %v494
    %859 = vmatprep.subr.mxu0 %v499
    %860 = vmatpush1.msra.mxu0 %v498
    %861 = vmatprep.subr.mxu0 %v503
    %862 = vmatpush1.msra.mxu0 %v502
    %863 = vmatprep.subr.mxu0 %v507
    %864 = vmatpush1.msra.mxu0 %v506
    %865 = vmatprep.subr.mxu0 %v511
    %866 = vmatpush1.msra.mxu0 %v510
    %867 = vmatprep.subr.mxu0 %v515
    %868 = vmatpush1.msra.mxu0 %v514
    %869 = vmatprep.subr.mxu0 %v519
    %870 = vmatpush1.msra.mxu0 %v518
    %871 = vmatprep.subr.mxu0 %v523
    %872 = vmatpush1.msra.mxu0 %v522
    %873 = vmatprep.subr.mxu0 %v527
    %874 = vmatpush1.msra.mxu0 %v526
    %875 = vmatprep.mubr.f32.mxu0 %v95
    %876 = vmatmul.mubr.f32.gmra.mrb[0].mxu0 %v94
    %v877 = vpop.f32.mrb[0].mxu0
    %v878 = vadd.f32 %v765, %v877
    %v879 = vpop.f32.mrb[0].mxu0
    %v880 = vadd.f32 %v767, %v879
    %881 = vmatprep.mubr.f32.mxu0 %v102
    %882 = vmatmul.mubr.f32.gmra.mrb[0].mxu0 %v101
    %v883 = vpop.f32.mrb[0].mxu0
    %v884 = vadd.f32 %v771, %v883
    %v885 = vpop.f32.mrb[0].mxu0
    %v886 = vadd.f32 %v773, %v885
    %887 = vmatprep.mubr.f32.mxu0 %v109
    %888 = vmatmul.mubr.f32.gmra.mrb[0].mxu0 %v108
    %v889 = vpop.f32.mrb[0].mxu0
    %v890 = vadd.f32 %v777, %v889
    %v891 = vpop.f32.mrb[0].mxu0
    %v892 = vadd.f32 %v779, %v891
    %893 = vmatprep.mubr.f32.mxu0 %v116
    %894 = vmatmul.mubr.f32.gmra.mrb[0].mxu0 %v115
    %v895 = vpop.f32.mrb[0].mxu0
    %v896 = vadd.f32 %v783, %v895
    %v897 = vpop.f32.mrb[0].mxu0
    %v898 = vadd.f32 %v785, %v897
    %899 = vmatprep.mubr.f32.mxu0 %v123
    %900 = vmatmul.mubr.f32.gmra.mrb[0].mxu0 %v122
    %v901 = vpop.f32.mrb[0].mxu0
    %v902 = vadd.f32 %v789, %v901
    %v903 = vpop.f32.mrb[0].mxu0
    %v904 = vadd.f32 %v791, %v903
    %905 = vmatprep.mubr.f32.mxu0 %v130
    %906 = vmatmul.mubr.f32.gmra.mrb[0].mxu0 %v129
    %v907 = vpop.f32.mrb[0].mxu0
    %v908 = vadd.f32 %v795, %v907
    %v909 = vpop.f32.mrb[0].mxu0
    %v910 = vadd.f32 %v797, %v909
    %911 = vmatprep.mubr.f32.mxu0 %v137
    %912 = vmatmul.mubr.f32.gmra.mrb[0].mxu0 %v136
    %v913 = vpop.f32.mrb[0].mxu0
    %v914 = vadd.f32 %v801, %v913
    %v915 = vpop.f32.mrb[0].mxu0
    %v916 = vadd.f32 %v803, %v915
    %917 = vmatprep.mubr.f32.mxu0 %v144
    %918 = vmatmul.mubr.f32.gmra.mrb[0].mxu0 %v143
    %v919 = vpop.f32.mrb[0].mxu0
    %v920 = vadd.f32 %v807, %v919
    %v921 = vpop.f32.mrb[0].mxu0
    %v922 = vadd.f32 %v809, %v921
    %923 = vdwg.mxu0
    %924 = vmatprep.subr.mxu0 %v531
    %925 = vmatpush1.msra.mxu0 %v530
    %926 = vmatprep.subr.mxu0 %v535
    %927 = vmatpush1.msra.mxu0 %v534
    %928 = vmatprep.subr.mxu0 0.0
    %929 = vmatpush1.msra.mxu0 0.0
    %930 = vmatprep.subr.mxu0 0.0
    %931 = vmatpush1.msra.mxu0 0.0
    %932 = vmatprep.subr.mxu0 0.0
    %933 = vmatpush1.msra.mxu0 0.0
    %934 = vmatprep.subr.mxu0 0.0
    %935 = vmatpush1.msra.mxu0 0.0
    %936 = vmatprep.subr.mxu0 0.0
    %937 = vmatpush1.msra.mxu0 0.0
    %938 = vmatprep.subr.mxu0 0.0
    %939 = vmatpush1.msra.mxu0 0.0
    %940 = vmatprep.subr.mxu0 0.0
    %941 = vmatpush1.msra.mxu0 0.0
    %942 = vmatprep.subr.mxu0 0.0
    %943 = vmatpush1.msra.mxu0 0.0
    %944 = vmatprep.subr.mxu0 0.0
    %945 = vmatpush1.msra.mxu0 0.0
    %946 = vmatprep.subr.mxu0 0.0
    %947 = vmatpush1.msra.mxu0 0.0
    %948 = vmatprep.subr.mxu0 0.0
    %949 = vmatpush1.msra.mxu0 0.0
    %950 = vmatprep.subr.mxu0 0.0
    %951 = vmatpush1.msra.mxu0 0.0
    %952 = vmatprep.subr.mxu0 0.0
    %953 = vmatpush1.msra.mxu0 0.0
    %954 = vmatprep.subr.mxu0 0.0
    %955 = vmatpush1.msra.mxu0 0.0
    %956 = vmatprep.subr.mxu0 0.0
    %957 = vmatpush1.msra.mxu0 0.0
    %958 = vmatprep.subr.mxu0 0.0
    %959 = vmatpush1.msra.mxu0 0.0
    %960 = vmatprep.subr.mxu0 0.0
    %961 = vmatpush1.msra.mxu0 0.0
    %962 = vmatprep.subr.mxu0 0.0
    %963 = vmatpush1.msra.mxu0 0.0
    %964 = vmatprep.subr.mxu0 0.0
    %965 = vmatpush1.msra.mxu0 0.0
    %966 = vmatprep.subr.mxu0 0.0
    %967 = vmatpush1.msra.mxu0 0.0
    %968 = vmatprep.subr.mxu0 0.0
    %969 = vmatpush1.msra.mxu0 0.0
    %970 = vmatprep.subr.mxu0 0.0
    %971 = vmatpush1.msra.mxu0 0.0
    %972 = vmatprep.subr.mxu0 0.0
    %973 = vmatpush1.msra.mxu0 0.0
    %974 = vmatprep.subr.mxu0 0.0
    %975 = vmatpush1.msra.mxu0 0.0
    %976 = vmatprep.subr.mxu0 0.0
    %977 = vmatpush1.msra.mxu0 0.0
    %978 = vmatprep.subr.mxu0 0.0
    %979 = vmatpush1.msra.mxu0 0.0
    %980 = vmatprep.subr.mxu0 0.0
    %981 = vmatpush1.msra.mxu0 0.0
    %982 = vmatprep.subr.mxu0 0.0
    %983 = vmatpush1.msra.mxu0 0.0
    %984 = vmatprep.subr.mxu0 0.0
    %985 = vmatpush1.msra.mxu0 0.0
    %986 = vmatprep.subr.mxu0 0.0
    %987 = vmatpush1.msra.mxu0 0.0
    %988 = vmatprep.mubr.f32.mxu0 0.0
    %989 = vmatmul.mubr.f32.gmra.mrb[0].mxu0 %v562
    %v990 = vpop.f32.mrb[0].mxu0
    %v991 = vadd.f32 %v878, %v990
    %v992 = vpop.f32.mrb[0].mxu0
    %v993 = vadd.f32 %v880, %v992
    %994 = vmatprep.mubr.f32.mxu0 0.0
    %995 = vmatmul.mubr.f32.gmra.mrb[0].mxu0 %v565
    %v996 = vpop.f32.mrb[0].mxu0
    %v997 = vadd.f32 %v884, %v996
    %v998 = vpop.f32.mrb[0].mxu0
    %v999 = vadd.f32 %v886, %v998
    %1000 = vmatprep.mubr.f32.mxu0 0.0
    %1001 = vmatmul.mubr.f32.gmra.mrb[0].mxu0 %v568
    %v1002 = vpop.f32.mrb[0].mxu0
    %v1003 = vadd.f32 %v890, %v1002
    %v1004 = vpop.f32.mrb[0].mxu0
    %v1005 = vadd.f32 %v892, %v1004
    %1006 = vmatprep.mubr.f32.mxu0 0.0
    %1007 = vmatmul.mubr.f32.gmra.mrb[0].mxu0 %v571
    %v1008 = vpop.f32.mrb[0].mxu0
    %v1009 = vadd.f32 %v896, %v1008
    %v1010 = vpop.f32.mrb[0].mxu0
    %v1011 = vadd.f32 %v898, %v1010
    %1012 = vmatprep.mubr.f32.mxu0 0.0
    %1013 = vmatmul.mubr.f32.gmra.mrb[0].mxu0 %v574
    %v1014 = vpop.f32.mrb[0].mxu0
    %v1015 = vadd.f32 %v902, %v1014
    %v1016 = vpop.f32.mrb[0].mxu0
    %v1017 = vadd.f32 %v904, %v1016
    %1018 = vmatprep.mubr.f32.mxu0 0.0
    %1019 = vmatmul.mubr.f32.gmra.mrb[0].mxu0 %v577
    %v1020 = vpop.f32.mrb[0].mxu0
    %v1021 = vadd.f32 %v908, %v1020
    %v1022 = vpop.f32.mrb[0].mxu0
    %v1023 = vadd.f32 %v910, %v1022
    %1024 = vmatprep.mubr.f32.mxu0 0.0
    %1025 = vmatmul.mubr.f32.gmra.mrb[0].mxu0 %v580
    %v1026 = vpop.f32.mrb[0].mxu0
    %v1027 = vadd.f32 %v914, %v1026
    %v1028 = vpop.f32.mrb[0].mxu0
    %v1029 = vadd.f32 %v916, %v1028
    %1030 = vmatprep.mubr.f32.mxu0 0.0
    %1031 = vmatmul.mubr.f32.gmra.mrb[0].mxu0 %v583
    %v1032 = vpop.f32.mrb[0].mxu0
    %v1033 = vadd.f32 %v920, %v1032
    %v1034 = vpop.f32.mrb[0].mxu0
    %v1035 = vadd.f32 %v922, %v1034
    %1036 = vdwg.mxu0
    %1037 = vmatprep.subr.mxu0 %v149
    %1038 = vmatpush1.msra.mxu0 %v148
    %1039 = vmatprep.subr.mxu0 %v153
    %1040 = vmatpush1.msra.mxu0 %v152
    %1041 = vmatprep.subr.mxu0 %v157
    %1042 = vmatpush1.msra.mxu0 %v156
    %1043 = vmatprep.subr.mxu0 %v161
    %1044 = vmatpush1.msra.mxu0 %v160
    %1045 = vmatprep.subr.mxu0 %v165
    %1046 = vmatpush1.msra.mxu0 %v164
    %1047 = vmatprep.subr.mxu0 %v169
    %1048 = vmatpush1.msra.mxu0 %v168
    %1049 = vmatprep.subr.mxu0 %v173
    %1050 = vmatpush1.msra.mxu0 %v172
    %1051 = vmatprep.subr.mxu0 %v177
    %1052 = vmatpush1.msra.mxu0 %v176
    %1053 = vmatprep.subr.mxu0 %v181
    %1054 = vmatpush1.msra.mxu0 %v180
    %1055 = vmatprep.subr.mxu0 %v185
    %1056 = vmatpush1.msra.mxu0 %v184
    %1057 = vmatprep.subr.mxu0 %v189
    %1058 = vmatpush1.msra.mxu0 %v188
    %1059 = vmatprep.subr.mxu0 %v193
    %1060 = vmatpush1.msra.mxu0 %v192
    %1061 = vmatprep.subr.mxu0 %v197
    %1062 = vmatpush1.msra.mxu0 %v196
    %1063 = vmatprep.subr.mxu0 %v201
    %1064 = vmatpush1.msra.mxu0 %v200
    %1065 = vmatprep.subr.mxu0 %v205
    %1066 = vmatpush1.msra.mxu0 %v204
    %1067 = vmatprep.subr.mxu0 %v209
    %1068 = vmatpush1.msra.mxu0 %v208
    %1069 = vmatprep.subr.mxu0 %v213
    %1070 = vmatpush1.msra.mxu0 %v212
    %1071 = vmatprep.subr.mxu0 %v217
    %1072 = vmatpush1.msra.mxu0 %v216
    %1073 = vmatprep.subr.mxu0 %v221
    %1074 = vmatpush1.msra.mxu0 %v220
    %1075 = vmatprep.subr.mxu0 %v225
    %1076 = vmatpush1.msra.mxu0 %v224
    %1077 = vmatprep.subr.mxu0 %v229
    %1078 = vmatpush1.msra.mxu0 %v228
    %1079 = vmatprep.subr.mxu0 %v233
    %1080 = vmatpush1.msra.mxu0 %v232
    %1081 = vmatprep.subr.mxu0 %v237
    %1082 = vmatpush1.msra.mxu0 %v236
    %1083 = vmatprep.subr.mxu0 %v241
    %1084 = vmatpush1.msra.mxu0 %v240
    %1085 = vmatprep.subr.mxu0 %v245
    %1086 = vmatpush1.msra.mxu0 %v244
    %1087 = vmatprep.subr.mxu0 %v249
    %1088 = vmatpush1.msra.mxu0 %v248
    %1089 = vmatprep.subr.mxu0 %v253
    %1090 = vmatpush1.msra.mxu0 %v252
    %1091 = vmatprep.subr.mxu0 %v257
    %1092 = vmatpush1.msra.mxu0 %v256
    %1093 = vmatprep.subr.mxu0 %v261
    %1094 = vmatpush1.msra.mxu0 %v260
    %1095 = vmatprep.subr.mxu0 %v265
    %1096 = vmatpush1.msra.mxu0 %v264
    %1097 = vmatprep.subr.mxu0 %v269
    %1098 = vmatpush1.msra.mxu0 %v268
    %1099 = vmatprep.subr.mxu0 %v273
    %1100 = vmatpush1.msra.mxu0 %v272
    %1101 = vmatprep.mubr.f32.mxu0 %v91
    %1102 = vmatmul.mubr.f32.gmra.mrb[0].mxu0 %v90
    %v1103 = vpop.f32.mrb[0].mxu0
    %v1104 = vadd.f32 %v551, %v1103
    %v1105 = vpop.f32.mrb[0].mxu0
    %v1106 = vadd.f32 %v555, %v1105
    %1107 = vmatprep.mubr.f32.mxu0 %v98
    %1108 = vmatmul.mubr.f32.gmra.mrb[0].mxu0 %v97
    %v1109 = vpop.f32.mrb[0].mxu0
    %v1110 = vadd.f32 %v551, %v1109
    %v1111 = vpop.f32.mrb[0].mxu0
    %v1112 = vadd.f32 %v555, %v1111
    %1113 = vmatprep.mubr.f32.mxu0 %v105
    %1114 = vmatmul.mubr.f32.gmra.mrb[0].mxu0 %v104
    %v1115 = vpop.f32.mrb[0].mxu0
    %v1116 = vadd.f32 %v551, %v1115
    %v1117 = vpop.f32.mrb[0].mxu0
    %v1118 = vadd.f32 %v555, %v1117
    %1119 = vmatprep.mubr.f32.mxu0 %v112
    %1120 = vmatmul.mubr.f32.gmra.mrb[0].mxu0 %v111
    %v1121 = vpop.f32.mrb[0].mxu0
    %v1122 = vadd.f32 %v551, %v1121
    %v1123 = vpop.f32.mrb[0].mxu0
    %v1124 = vadd.f32 %v555, %v1123
    %1125 = vmatprep.mubr.f32.mxu0 %v119
    %1126 = vmatmul.mubr.f32.gmra.mrb[0].mxu0 %v118
    %v1127 = vpop.f32.mrb[0].mxu0
    %v1128 = vadd.f32 %v551, %v1127
    %v1129 = vpop.f32.mrb[0].mxu0
    %v1130 = vadd.f32 %v555, %v1129
    %1131 = vmatprep.mubr.f32.mxu0 %v126
    %1132 = vmatmul.mubr.f32.gmra.mrb[0].mxu0 %v125
    %v1133 = vpop.f32.mrb[0].mxu0
    %v1134 = vadd.f32 %v551, %v1133
    %v1135 = vpop.f32.mrb[0].mxu0
    %v1136 = vadd.f32 %v555, %v1135
    %1137 = vmatprep.mubr.f32.mxu0 %v133
    %1138 = vmatmul.mubr.f32.gmra.mrb[0].mxu0 %v132
    %v1139 = vpop.f32.mrb[0].mxu0
    %v1140 = vadd.f32 %v551, %v1139
    %v1141 = vpop.f32.mrb[0].mxu0
    %v1142 = vadd.f32 %v555, %v1141
    %1143 = vmatprep.mubr.f32.mxu0 %v140
    %1144 = vmatmul.mubr.f32.gmra.mrb[0].mxu0 %v139
    %v1145 = vpop.f32.mrb[0].mxu0
    %v1146 = vadd.f32 %v551, %v1145
    %v1147 = vpop.f32.mrb[0].mxu0
    %v1148 = vadd.f32 %v555, %v1147
    %1149 = vdwg.mxu0
    %1150 = vmatprep.subr.mxu0 %v277
    %1151 = vmatpush1.msra.mxu0 %v276
    %1152 = vmatprep.subr.mxu0 %v281
    %1153 = vmatpush1.msra.mxu0 %v280
    %1154 = vmatprep.subr.mxu0 %v285
    %1155 = vmatpush1.msra.mxu0 %v284
    %1156 = vmatprep.subr.mxu0 %v289
    %1157 = vmatpush1.msra.mxu0 %v288
    %1158 = vmatprep.subr.mxu0 %v293
    %1159 = vmatpush1.msra.mxu0 %v292
    %1160 = vmatprep.subr.mxu0 %v297
    %1161 = vmatpush1.msra.mxu0 %v296
    %1162 = vmatprep.subr.mxu0 %v301
    %1163 = vmatpush1.msra.mxu0 %v300
    %1164 = vmatprep.subr.mxu0 %v305
    %1165 = vmatpush1.msra.mxu0 %v304
    %1166 = vmatprep.subr.mxu0 %v309
    %1167 = vmatpush1.msra.mxu0 %v308
    %1168 = vmatprep.subr.mxu0 %v313
    %1169 = vmatpush1.msra.mxu0 %v312
    %1170 = vmatprep.subr.mxu0 %v317
    %1171 = vmatpush1.msra.mxu0 %v316
    %1172 = vmatprep.subr.mxu0 %v321
    %1173 = vmatpush1.msra.mxu0 %v320
    %1174 = vmatprep.subr.mxu0 %v325
    %1175 = vmatpush1.msra.mxu0 %v324
    %1176 = vmatprep.subr.mxu0 %v329
    %1177 = vmatpush1.msra.mxu0 %v328
    %1178 = vmatprep.subr.mxu0 %v333
    %1179 = vmatpush1.msra.mxu0 %v332
    %1180 = vmatprep.subr.mxu0 %v337
    %1181 = vmatpush1.msra.mxu0 %v336
    %1182 = vmatprep.subr.mxu0 %v341
    %1183 = vmatpush1.msra.mxu0 %v340
    %1184 = vmatprep.subr.mxu0 %v345
    %1185 = vmatpush1.msra.mxu0 %v344
    %1186 = vmatprep.subr.mxu0 %v349
    %1187 = vmatpush1.msra.mxu0 %v348
    %1188 = vmatprep.subr.mxu0 %v353
    %1189 = vmatpush1.msra.mxu0 %v352
    %1190 = vmatprep.subr.mxu0 %v357
    %1191 = vmatpush1.msra.mxu0 %v356
    %1192 = vmatprep.subr.mxu0 %v361
    %1193 = vmatpush1.msra.mxu0 %v360
    %1194 = vmatprep.subr.mxu0 %v365
    %1195 = vmatpush1.msra.mxu0 %v364
    %1196 = vmatprep.subr.mxu0 %v369
    %1197 = vmatpush1.msra.mxu0 %v368
    %1198 = vmatprep.subr.mxu0 %v373
    %1199 = vmatpush1.msra.mxu0 %v372
    %1200 = vmatprep.subr.mxu0 %v377
    %1201 = vmatpush1.msra.mxu0 %v376
    %1202 = vmatprep.subr.mxu0 %v381
    %1203 = vmatpush1.msra.mxu0 %v380
    %1204 = vmatprep.subr.mxu0 %v385
    %1205 = vmatpush1.msra.mxu0 %v384
    %1206 = vmatprep.subr.mxu0 %v389
    %1207 = vmatpush1.msra.mxu0 %v388
    %1208 = vmatprep.subr.mxu0 %v393
    %1209 = vmatpush1.msra.mxu0 %v392
    %1210 = vmatprep.subr.mxu0 %v397
    %1211 = vmatpush1.msra.mxu0 %v396
    %1212 = vmatprep.subr.mxu0 %v401
    %1213 = vmatpush1.msra.mxu0 %v400
    %1214 = vmatprep.mubr.f32.mxu0 %v93
    %1215 = vmatmul.mubr.f32.gmra.mrb[0].mxu0 %v92
    %v1216 = vpop.f32.mrb[0].mxu0
    %v1217 = vadd.f32 %v1104, %v1216
    %v1218 = vpop.f32.mrb[0].mxu0
    %v1219 = vadd.f32 %v1106, %v1218
    %1220 = vmatprep.mubr.f32.mxu0 %v100
    %1221 = vmatmul.mubr.f32.gmra.mrb[0].mxu0 %v99
    %v1222 = vpop.f32.mrb[0].mxu0
    %v1223 = vadd.f32 %v1110, %v1222
    %v1224 = vpop.f32.mrb[0].mxu0
    %v1225 = vadd.f32 %v1112, %v1224
    %1226 = vmatprep.mubr.f32.mxu0 %v107
    %1227 = vmatmul.mubr.f32.gmra.mrb[0].mxu0 %v106
    %v1228 = vpop.f32.mrb[0].mxu0
    %v1229 = vadd.f32 %v1116, %v1228
    %v1230 = vpop.f32.mrb[0].mxu0
    %v1231 = vadd.f32 %v1118, %v1230
    %1232 = vmatprep.mubr.f32.mxu0 %v114
    %1233 = vmatmul.mubr.f32.gmra.mrb[0].mxu0 %v113
    %v1234 = vpop.f32.mrb[0].mxu0
    %v1235 = vadd.f32 %v1122, %v1234
    %v1236 = vpop.f32.mrb[0].mxu0
    %v1237 = vadd.f32 %v1124, %v1236
    %1238 = vmatprep.mubr.f32.mxu0 %v121
    %1239 = vmatmul.mubr.f32.gmra.mrb[0].mxu0 %v120
    %v1240 = vpop.f32.mrb[0].mxu0
    %v1241 = vadd.f32 %v1128, %v1240
    %v1242 = vpop.f32.mrb[0].mxu0
    %v1243 = vadd.f32 %v1130, %v1242
    %1244 = vmatprep.mubr.f32.mxu0 %v128
    %1245 = vmatmul.mubr.f32.gmra.mrb[0].mxu0 %v127
    %v1246 = vpop.f32.mrb[0].mxu0
    %v1247 = vadd.f32 %v1134, %v1246
    %v1248 = vpop.f32.mrb[0].mxu0
    %v1249 = vadd.f32 %v1136, %v1248
    %1250 = vmatprep.mubr.f32.mxu0 %v135
    %1251 = vmatmul.mubr.f32.gmra.mrb[0].mxu0 %v134
    %v1252 = vpop.f32.mrb[0].mxu0
    %v1253 = vadd.f32 %v1140, %v1252
    %v1254 = vpop.f32.mrb[0].mxu0
    %v1255 = vadd.f32 %v1142, %v1254
    %1256 = vmatprep.mubr.f32.mxu0 %v142
    %1257 = vmatmul.mubr.f32.gmra.mrb[0].mxu0 %v141
    %v1258 = vpop.f32.mrb[0].mxu0
    %v1259 = vadd.f32 %v1146, %v1258
    %v1260 = vpop.f32.mrb[0].mxu0
    %v1261 = vadd.f32 %v1148, %v1260
    %1262 = vdwg.mxu0
    %1263 = vmatprep.subr.mxu0 %v405
    %1264 = vmatpush1.msra.mxu0 %v404
    %1265 = vmatprep.subr.mxu0 %v409
    %1266 = vmatpush1.msra.mxu0 %v408
    %1267 = vmatprep.subr.mxu0 %v413
    %1268 = vmatpush1.msra.mxu0 %v412
    %1269 = vmatprep.subr.mxu0 %v417
    %1270 = vmatpush1.msra.mxu0 %v416
    %1271 = vmatprep.subr.mxu0 %v421
    %1272 = vmatpush1.msra.mxu0 %v420
    %1273 = vmatprep.subr.mxu0 %v425
    %1274 = vmatpush1.msra.mxu0 %v424
    %1275 = vmatprep.subr.mxu0 %v429
    %1276 = vmatpush1.msra.mxu0 %v428
    %1277 = vmatprep.subr.mxu0 %v433
    %1278 = vmatpush1.msra.mxu0 %v432
    %1279 = vmatprep.subr.mxu0 %v437
    %1280 = vmatpush1.msra.mxu0 %v436
    %1281 = vmatprep.subr.mxu0 %v441
    %1282 = vmatpush1.msra.mxu0 %v440
    %1283 = vmatprep.subr.mxu0 %v445
    %1284 = vmatpush1.msra.mxu0 %v444
    %1285 = vmatprep.subr.mxu0 %v449
    %1286 = vmatpush1.msra.mxu0 %v448
    %1287 = vmatprep.subr.mxu0 %v453
    %1288 = vmatpush1.msra.mxu0 %v452
    %1289 = vmatprep.subr.mxu0 %v457
    %1290 = vmatpush1.msra.mxu0 %v456
    %1291 = vmatprep.subr.mxu0 %v461
    %1292 = vmatpush1.msra.mxu0 %v460
    %1293 = vmatprep.subr.mxu0 %v465
    %1294 = vmatpush1.msra.mxu0 %v464
    %1295 = vmatprep.subr.mxu0 %v469
    %1296 = vmatpush1.msra.mxu0 %v468
    %1297 = vmatprep.subr.mxu0 %v473
    %1298 = vmatpush1.msra.mxu0 %v472
    %1299 = vmatprep.subr.mxu0 %v477
    %1300 = vmatpush1.msra.mxu0 %v476
    %1301 = vmatprep.subr.mxu0 %v481
    %1302 = vmatpush1.msra.mxu0 %v480
    %1303 = vmatprep.subr.mxu0 %v485
    %1304 = vmatpush1.msra.mxu0 %v484
    %1305 = vmatprep.subr.mxu0 %v489
    %1306 = vmatpush1.msra.mxu0 %v488
    %1307 = vmatprep.subr.mxu0 %v493
    %1308 = vmatpush1.msra.mxu0 %v492
    %1309 = vmatprep.subr.mxu0 %v497
    %1310 = vmatpush1.msra.mxu0 %v496
    %1311 = vmatprep.subr.mxu0 %v501
    %1312 = vmatpush1.msra.mxu0 %v500
    %1313 = vmatprep.subr.mxu0 %v505
    %1314 = vmatpush1.msra.mxu0 %v504
    %1315 = vmatprep.subr.mxu0 %v509
    %1316 = vmatpush1.msra.mxu0 %v508
    %1317 = vmatprep.subr.mxu0 %v513
    %1318 = vmatpush1.msra.mxu0 %v512
    %1319 = vmatprep.subr.mxu0 %v517
    %1320 = vmatpush1.msra.mxu0 %v516
    %1321 = vmatprep.subr.mxu0 %v521
    %1322 = vmatpush1.msra.mxu0 %v520
    %1323 = vmatprep.subr.mxu0 %v525
    %1324 = vmatpush1.msra.mxu0 %v524
    %1325 = vmatprep.subr.mxu0 %v529
    %1326 = vmatpush1.msra.mxu0 %v528
    %1327 = vmatprep.mubr.f32.mxu0 %v95
    %1328 = vmatmul.mubr.f32.gmra.mrb[0].mxu0 %v94
    %v1329 = vpop.f32.mrb[0].mxu0
    %v1330 = vadd.f32 %v1217, %v1329
    %v1331 = vpop.f32.mrb[0].mxu0
    %v1332 = vadd.f32 %v1219, %v1331
    %1333 = vmatprep.mubr.f32.mxu0 %v102
    %1334 = vmatmul.mubr.f32.gmra.mrb[0].mxu0 %v101
    %v1335 = vpop.f32.mrb[0].mxu0
    %v1336 = vadd.f32 %v1223, %v1335
    %v1337 = vpop.f32.mrb[0].mxu0
    %v1338 = vadd.f32 %v1225, %v1337
    %1339 = vmatprep.mubr.f32.mxu0 %v109
    %1340 = vmatmul.mubr.f32.gmra.mrb[0].mxu0 %v108
    %v1341 = vpop.f32.mrb[0].mxu0
    %v1342 = vadd.f32 %v1229, %v1341
    %v1343 = vpop.f32.mrb[0].mxu0
    %v1344 = vadd.f32 %v1231, %v1343
    %1345 = vmatprep.mubr.f32.mxu0 %v116
    %1346 = vmatmul.mubr.f32.gmra.mrb[0].mxu0 %v115
    %v1347 = vpop.f32.mrb[0].mxu0
    %v1348 = vadd.f32 %v1235, %v1347
    %v1349 = vpop.f32.mrb[0].mxu0
    %v1350 = vadd.f32 %v1237, %v1349
    %1351 = vmatprep.mubr.f32.mxu0 %v123
    %1352 = vmatmul.mubr.f32.gmra.mrb[0].mxu0 %v122
    %v1353 = vpop.f32.mrb[0].mxu0
    %v1354 = vadd.f32 %v1241, %v1353
    %v1355 = vpop.f32.mrb[0].mxu0
    %v1356 = vadd.f32 %v1243, %v1355
    %1357 = vmatprep.mubr.f32.mxu0 %v130
    %1358 = vmatmul.mubr.f32.gmra.mrb[0].mxu0 %v129
    %v1359 = vpop.f32.mrb[0].mxu0
    %v1360 = vadd.f32 %v1247, %v1359
    %v1361 = vpop.f32.mrb[0].mxu0
    %v1362 = vadd.f32 %v1249, %v1361
    %1363 = vmatprep.mubr.f32.mxu0 %v137
    %1364 = vmatmul.mubr.f32.gmra.mrb[0].mxu0 %v136
    %v1365 = vpop.f32.mrb[0].mxu0
    %v1366 = vadd.f32 %v1253, %v1365
    %v1367 = vpop.f32.mrb[0].mxu0
    %v1368 = vadd.f32 %v1255, %v1367
    %1369 = vmatprep.mubr.f32.mxu0 %v144
    %1370 = vmatmul.mubr.f32.gmra.mrb[0].mxu0 %v143
    %v1371 = vpop.f32.mrb[0].mxu0
    %v1372 = vadd.f32 %v1259, %v1371
    %v1373 = vpop.f32.mrb[0].mxu0
    %v1374 = vadd.f32 %v1261, %v1373
    %1375 = vdwg.mxu0
    %1376 = vmatprep.subr.mxu0 %v533
    %1377 = vmatpush1.msra.mxu0 %v532
    %1378 = vmatprep.subr.mxu0 %v537
    %1379 = vmatpush1.msra.mxu0 %v536
    %1380 = vmatprep.subr.mxu0 0.0
    %1381 = vmatpush1.msra.mxu0 0.0
    %1382 = vmatprep.subr.mxu0 0.0
    %1383 = vmatpush1.msra.mxu0 0.0
    %1384 = vmatprep.subr.mxu0 0.0
    %1385 = vmatpush1.msra.mxu0 0.0
    %1386 = vmatprep.subr.mxu0 0.0
    %1387 = vmatpush1.msra.mxu0 0.0
    %1388 = vmatprep.subr.mxu0 0.0
    %1389 = vmatpush1.msra.mxu0 0.0
    %1390 = vmatprep.subr.mxu0 0.0
    %1391 = vmatpush1.msra.mxu0 0.0
    %1392 = vmatprep.subr.mxu0 0.0
    %1393 = vmatpush1.msra.mxu0 0.0
    %1394 = vmatprep.subr.mxu0 0.0
    %1395 = vmatpush1.msra.mxu0 0.0
    %1396 = vmatprep.subr.mxu0 0.0
    %1397 = vmatpush1.msra.mxu0 0.0
    %1398 = vmatprep.subr.mxu0 0.0
    %1399 = vmatpush1.msra.mxu0 0.0
    %1400 = vmatprep.subr.mxu0 0.0
    %1401 = vmatpush1.msra.mxu0 0.0
    %1402 = vmatprep.subr.mxu0 0.0
    %1403 = vmatpush1.msra.mxu0 0.0
    %1404 = vmatprep.subr.mxu0 0.0
    %1405 = vmatpush1.msra.mxu0 0.0
    %1406 = vmatprep.subr.mxu0 0.0
    %1407 = vmatpush1.msra.mxu0 0.0
    %1408 = vmatprep.subr.mxu0 0.0
    %1409 = vmatpush1.msra.mxu0 0.0
    %1410 = vmatprep.subr.mxu0 0.0
    %1411 = vmatpush1.msra.mxu0 0.0
    %1412 = vmatprep.subr.mxu0 0.0
    %1413 = vmatpush1.msra.mxu0 0.0
    %1414 = vmatprep.subr.mxu0 0.0
    %1415 = vmatpush1.msra.mxu0 0.0
    %1416 = vmatprep.subr.mxu0 0.0
    %1417 = vmatpush1.msra.mxu0 0.0
    %1418 = vmatprep.subr.mxu0 0.0
    %1419 = vmatpush1.msra.mxu0 0.0
    %1420 = vmatprep.subr.mxu0 0.0
    %1421 = vmatpush1.msra.mxu0 0.0
    %1422 = vmatprep.subr.mxu0 0.0
    %1423 = vmatpush1.msra.mxu0 0.0
    %1424 = vmatprep.subr.mxu0 0.0
    %1425 = vmatpush1.msra.mxu0 0.0
    %1426 = vmatprep.subr.mxu0 0.0
    %1427 = vmatpush1.msra.mxu0 0.0
    %1428 = vmatprep.subr.mxu0 0.0
    %1429 = vmatpush1.msra.mxu0 0.0
    %1430 = vmatprep.subr.mxu0 0.0
    %1431 = vmatpush1.msra.mxu0 0.0
    %1432 = vmatprep.subr.mxu0 0.0
    %1433 = vmatpush1.msra.mxu0 0.0
    %1434 = vmatprep.subr.mxu0 0.0
    %1435 = vmatpush1.msra.mxu0 0.0
    %1436 = vmatprep.subr.mxu0 0.0
    %1437 = vmatpush1.msra.mxu0 0.0
    %1438 = vmatprep.subr.mxu0 0.0
    %1439 = vmatpush1.msra.mxu0 0.0
    %1440 = vmatprep.mubr.f32.mxu0 0.0
    %1441 = vmatmul.mubr.f32.gmra.mrb[0].mxu0 %v562
    %v1442 = vpop.f32.mrb[0].mxu0
    %v1443 = vadd.f32 %v1330, %v1442
    %v1444 = vpop.f32.mrb[0].mxu0
    %v1445 = vadd.f32 %v1332, %v1444
    %1446 = vmatprep.mubr.f32.mxu0 0.0
    %1447 = vmatmul.mubr.f32.gmra.mrb[0].mxu0 %v565
    %v1448 = vpop.f32.mrb[0].mxu0
    %v1449 = vadd.f32 %v1336, %v1448
    %v1450 = vpop.f32.mrb[0].mxu0
    %v1451 = vadd.f32 %v1338, %v1450
    %1452 = vmatprep.mubr.f32.mxu0 0.0
    %1453 = vmatmul.mubr.f32.gmra.mrb[0].mxu0 %v568
    %v1454 = vpop.f32.mrb[0].mxu0
    %v1455 = vadd.f32 %v1342, %v1454
    %v1456 = vpop.f32.mrb[0].mxu0
    %v1457 = vadd.f32 %v1344, %v1456
    %1458 = vmatprep.mubr.f32.mxu0 0.0
    %1459 = vmatmul.mubr.f32.gmra.mrb[0].mxu0 %v571
    %v1460 = vpop.f32.mrb[0].mxu0
    %v1461 = vadd.f32 %v1348, %v1460
    %v1462 = vpop.f32.mrb[0].mxu0
    %v1463 = vadd.f32 %v1350, %v1462
    %1464 = vmatprep.mubr.f32.mxu0 0.0
    %1465 = vmatmul.mubr.f32.gmra.mrb[0].mxu0 %v574
    %v1466 = vpop.f32.mrb[0].mxu0
    %v1467 = vadd.f32 %v1354, %v1466
    %v1468 = vpop.f32.mrb[0].mxu0
    %v1469 = vadd.f32 %v1356, %v1468
    %1470 = vmatprep.mubr.f32.mxu0 0.0
    %1471 = vmatmul.mubr.f32.gmra.mrb[0].mxu0 %v577
    %v1472 = vpop.f32.mrb[0].mxu0
    %v1473 = vadd.f32 %v1360, %v1472
    %v1474 = vpop.f32.mrb[0].mxu0
    %v1475 = vadd.f32 %v1362, %v1474
    %1476 = vmatprep.mubr.f32.mxu0 0.0
    %1477 = vmatmul.mubr.f32.gmra.mrb[0].mxu0 %v580
    %v1478 = vpop.f32.mrb[0].mxu0
    %v1479 = vadd.f32 %v1366, %v1478
    %v1480 = vpop.f32.mrb[0].mxu0
    %v1481 = vadd.f32 %v1368, %v1480
    %1482 = vmatprep.mubr.f32.mxu0 0.0
    %1483 = vmatmul.mubr.f32.gmra.mrb[0].mxu0 %v583
    %v1484 = vpop.f32.mrb[0].mxu0
    %v1485 = vadd.f32 %v1372, %v1484
    %v1486 = vpop.f32.mrb[0].mxu0
    %v1487 = vadd.f32 %v1374, %v1486
    %1488 = vdwg.mxu0
    %v1489 = vmax.f32 %v991, 0.0
    %v1490 = vmax.f32 %v993, 0.0
    %v1491 = vmax.f32 %v1443, 0.0
    %v1492 = vmax.f32 %v1445, 0.0
    %v1493 = vmax.f32 %v997, 0.0
    %v1494 = vmax.f32 %v999, 0.0
    %v1495 = vmax.f32 %v1449, 0.0
    %v1496 = vmax.f32 %v1451, 0.0
    %v1497 = vmax.f32 %v1003, 0.0
    %v1498 = vmax.f32 %v1005, 0.0
    %v1499 = vmax.f32 %v1455, 0.0
    %v1500 = vmax.f32 %v1457, 0.0
    %v1501 = vmax.f32 %v1009, 0.0
    %v1502 = vmax.f32 %v1011, 0.0
    %v1503 = vmax.f32 %v1461, 0.0
    %v1504 = vmax.f32 %v1463, 0.0
    %v1505 = vmax.f32 %v1015, 0.0
    %v1506 = vmax.f32 %v1017, 0.0
    %v1507 = vmax.f32 %v1467, 0.0
    %v1508 = vmax.f32 %v1469, 0.0
    %v1509 = vmax.f32 %v1021, 0.0
    %v1510 = vmax.f32 %v1023, 0.0
    %v1511 = vmax.f32 %v1473, 0.0
    %v1512 = vmax.f32 %v1475, 0.0
    %v1513 = vmax.f32 %v1027, 0.0
    %v1514 = vmax.f32 %v1029, 0.0
    %v1515 = vmax.f32 %v1479, 0.0
    %v1516 = vmax.f32 %v1481, 0.0
    %v1517 = vmax.f32 %v1033, 0.0
    %v1518 = vmax.f32 %v1035, 0.0
    %v1519 = vmax.f32 %v1485, 0.0
    %v1520 = vmax.f32 %v1487, 0.0
    %v1521 = vld [vmem:[#allocation7] sm:$0xff]
    %v1522 = vld [vmem:[#allocation7 + $0x8] sm:$0xff]
    %v1523 = vld [vmem:[#allocation7 + $0x10] sm:$0xff]
    %v1524 = vld [vmem:[#allocation7 + $0x18] sm:$0xff]
    %v1525 = vld [vmem:[#allocation7 + $0x20] sm:$0xff]
    %v1526 = vld [vmem:[#allocation7 + $0x28] sm:$0xff]
    %v1527 = vld [vmem:[#allocation7 + $0x30] sm:$0xff]
    %v1528 = vld [vmem:[#allocation7 + $0x38] sm:$0xff]
    %v1529 = vld [vmem:[#allocation7 + $0x40] sm:$0xff]
    %v1530 = vld [vmem:[#allocation7 + $0x48] sm:$0xff]
    %v1531 = vld [vmem:[#allocation7 + $0x50] sm:$0xff]
    %v1532 = vld [vmem:[#allocation7 + $0x58] sm:$0xff]
    %v1533 = vld [vmem:[#allocation7 + $0x60] sm:$0xff]
    %v1534 = vld [vmem:[#allocation7 + $0x68] sm:$0xff]
    %v1535 = vld [vmem:[#allocation7 + $0x70] sm:$0xff]
    %v1536 = vld [vmem:[#allocation7 + $0x78] sm:$0xff]
    %v1537 = vld [vmem:[#allocation7 + $0x80] sm:$0xff]
    %v1538 = vld [vmem:[#allocation7 + $0x88] sm:$0xff]
    %v1539 = vld [vmem:[#allocation7 + $0x90] sm:$0xff]
    %v1540 = vld [vmem:[#allocation7 + $0x98] sm:$0xff]
    %v1541 = vld [vmem:[#allocation7 + $0xa0] sm:$0xff]
    %v1542 = vld [vmem:[#allocation7 + $0xa8] sm:$0xff]
    %v1543 = vld [vmem:[#allocation7 + $0xb0] sm:$0xff]
    %v1544 = vld [vmem:[#allocation7 + $0xb8] sm:$0xff]
    %v1545 = vld [vmem:[#allocation7 + $0xc0] sm:$0xff]
    %v1546 = vld [vmem:[#allocation7 + $0xc8] sm:$0xff]
    %v1547 = vld [vmem:[#allocation7 + $0xd0] sm:$0xff]
    %v1548 = vld [vmem:[#allocation7 + $0xd8] sm:$0xff]
    %v1549 = vld [vmem:[#allocation7 + $0xe0] sm:$0xff]
    %v1550 = vld [vmem:[#allocation7 + $0xe8] sm:$0xff]
    %v1551 = vld [vmem:[#allocation7 + $0xf0] sm:$0xff]
    %v1552 = vld [vmem:[#allocation7 + $0xf8] sm:$0xff]
    %v1553 = vld [vmem:[#allocation7 + $0x100] sm:$0xff]
    %v1554 = vld [vmem:[#allocation7 + $0x108] sm:$0xff]
    %v1555 = vld [vmem:[#allocation7 + $0x110] sm:$0xff]
    %v1556 = vld [vmem:[#allocation7 + $0x118] sm:$0xff]
    %v1557 = vld [vmem:[#allocation7 + $0x120] sm:$0xff]
    %v1558 = vld [vmem:[#allocation7 + $0x128] sm:$0xff]
    %v1559 = vld [vmem:[#allocation7 + $0x130] sm:$0xff]
    %v1560 = vld [vmem:[#allocation7 + $0x138] sm:$0xff]
    %v1561 = vld [vmem:[#allocation7 + $0x140] sm:$0xff]
    %v1562 = vld [vmem:[#allocation7 + $0x148] sm:$0xff]
    %v1563 = vld [vmem:[#allocation7 + $0x150] sm:$0xff]
    %v1564 = vld [vmem:[#allocation7 + $0x158] sm:$0xff]
    %v1565 = vld [vmem:[#allocation7 + $0x160] sm:$0xff]
    %v1566 = vld [vmem:[#allocation7 + $0x168] sm:$0xff]
    %v1567 = vld [vmem:[#allocation7 + $0x170] sm:$0xff]
    %v1568 = vld [vmem:[#allocation7 + $0x178] sm:$0xff]
    %v1569 = vld [vmem:[#allocation7 + $0x180] sm:$0xff]
    %v1570 = vld [vmem:[#allocation7 + $0x188] sm:$0xff]
    %v1571 = vld [vmem:[#allocation7 + $0x190] sm:$0xff]
    %v1572 = vld [vmem:[#allocation7 + $0x198] sm:$0xff]
    %v1573 = vld [vmem:[#allocation7 + $0x1a0] sm:$0xff]
    %v1574 = vld [vmem:[#allocation7 + $0x1a8] sm:$0xff]
    %v1575 = vld [vmem:[#allocation7 + $0x1b0] sm:$0xff]
    %v1576 = vld [vmem:[#allocation7 + $0x1b8] sm:$0xff]
    %v1577 = vld [vmem:[#allocation7 + $0x1c0] sm:$0xff]
    %v1578 = vld [vmem:[#allocation7 + $0x1c8] sm:$0xff]
    %v1579 = vld [vmem:[#allocation7 + $0x1d0] sm:$0xff]
    %v1580 = vld [vmem:[#allocation7 + $0x1d8] sm:$0xff]
    %v1581 = vld [vmem:[#allocation7 + $0x1e0] sm:$0xff]
    %v1582 = vld [vmem:[#allocation7 + $0x1e8] sm:$0xff]
    %v1583 = vld [vmem:[#allocation7 + $0x1f0] sm:$0xff]
    %v1584 = vld [vmem:[#allocation7 + $0x1f8] sm:$0xff]
    %v1585 = vld [vmem:[#allocation7 + $0x200] sm:$0xff]
    %v1586 = vld [vmem:[#allocation7 + $0x208] sm:$0xff]
    %v1587 = vld [vmem:[#allocation7 + $0x210] sm:$0xff]
    %v1588 = vld [vmem:[#allocation7 + $0x218] sm:$0xff]
    %v1589 = vld [vmem:[#allocation7 + $0x220] sm:$0xff]
    %v1590 = vld [vmem:[#allocation7 + $0x228] sm:$0xff]
    %v1591 = vld [vmem:[#allocation7 + $0x230] sm:$0xff]
    %v1592 = vld [vmem:[#allocation7 + $0x238] sm:$0xff]
    %v1593 = vld [vmem:[#allocation7 + $0x240] sm:$0xff]
    %v1594 = vld [vmem:[#allocation7 + $0x248] sm:$0xff]
    %v1595 = vld [vmem:[#allocation7 + $0x250] sm:$0xff]
    %v1596 = vld [vmem:[#allocation7 + $0x258] sm:$0xff]
    %v1597 = vld [vmem:[#allocation7 + $0x260] sm:$0xff]
    %v1598 = vld [vmem:[#allocation7 + $0x268] sm:$0xff]
    %v1599 = vld [vmem:[#allocation7 + $0x270] sm:$0xff]
    %v1600 = vld [vmem:[#allocation7 + $0x278] sm:$0xff]
    %v1601 = vld [vmem:[#allocation7 + $0x280] sm:$0xff]
    %v1602 = vld [vmem:[#allocation7 + $0x288] sm:$0xff]
    %v1603 = vld [vmem:[#allocation7 + $0x290] sm:$0xff]
    %v1604 = vld [vmem:[#allocation7 + $0x298] sm:$0xff]
    %v1605 = vld [vmem:[#allocation7 + $0x2a0] sm:$0xff]
    %v1606 = vld [vmem:[#allocation7 + $0x2a8] sm:$0xff]
    %v1607 = vld [vmem:[#allocation7 + $0x2b0] sm:$0xff]
    %v1608 = vld [vmem:[#allocation7 + $0x2b8] sm:$0xff]
    %v1609 = vld [vmem:[#allocation7 + $0x2c0] sm:$0xff]
    %v1610 = vld [vmem:[#allocation7 + $0x2c8] sm:$0xff]
    %v1611 = vld [vmem:[#allocation7 + $0x2d0] sm:$0xff]
    %v1612 = vld [vmem:[#allocation7 + $0x2d8] sm:$0xff]
    %v1613 = vld [vmem:[#allocation7 + $0x2e0] sm:$0xff]
    %v1614 = vld [vmem:[#allocation7 + $0x2e8] sm:$0xff]
    %v1615 = vld [vmem:[#allocation7 + $0x2f0] sm:$0xff]
    %v1616 = vld [vmem:[#allocation7 + $0x2f8] sm:$0xff]
    %v1617 = vld [vmem:[#allocation7 + $0x300] sm:$0xff]
    %v1618 = vld [vmem:[#allocation7 + $0x308] sm:$0xff]
    %v1619 = vld [vmem:[#allocation7 + $0x310] sm:$0xff]
    %v1620 = vld [vmem:[#allocation7 + $0x318] sm:$0xff]
    %v1621 = vld [vmem:[#allocation7 + $0x320] sm:$0xff]
    %v1622 = vld [vmem:[#allocation7 + $0x328] sm:$0xff]
    %v1623 = vld [vmem:[#allocation7 + $0x330] sm:$0xff]
    %v1624 = vld [vmem:[#allocation7 + $0x338] sm:$0xff]
    %v1625 = vld [vmem:[#allocation7 + $0x340] sm:$0xff]
    %v1626 = vld [vmem:[#allocation7 + $0x348] sm:$0xff]
    %v1627 = vld [vmem:[#allocation7 + $0x350] sm:$0xff]
    %v1628 = vld [vmem:[#allocation7 + $0x358] sm:$0xff]
    %v1629 = vld [vmem:[#allocation7 + $0x360] sm:$0xff]
    %v1630 = vld [vmem:[#allocation7 + $0x368] sm:$0xff]
    %v1631 = vld [vmem:[#allocation7 + $0x370] sm:$0xff]
    %v1632 = vld [vmem:[#allocation7 + $0x378] sm:$0xff]
    %v1633 = vld [vmem:[#allocation7 + $0x380] sm:$0xff]
    %v1634 = vld [vmem:[#allocation7 + $0x388] sm:$0xff]
    %v1635 = vld [vmem:[#allocation7 + $0x390] sm:$0xff]
    %v1636 = vld [vmem:[#allocation7 + $0x398] sm:$0xff]
    %v1637 = vld [vmem:[#allocation7 + $0x3a0] sm:$0xff]
    %v1638 = vld [vmem:[#allocation7 + $0x3a8] sm:$0xff]
    %v1639 = vld [vmem:[#allocation7 + $0x3b0] sm:$0xff]
    %v1640 = vld [vmem:[#allocation7 + $0x3b8] sm:$0xff]
    %v1641 = vld [vmem:[#allocation7 + $0x3c0] sm:$0xff]
    %v1642 = vld [vmem:[#allocation7 + $0x3c8] sm:$0xff]
    %v1643 = vld [vmem:[#allocation7 + $0x3d0] sm:$0xff]
    %v1644 = vld [vmem:[#allocation7 + $0x3d8] sm:$0xff]
    %v1645 = vld [vmem:[#allocation7 + $0x3e0] sm:$0xff]
    %v1646 = vld [vmem:[#allocation7 + $0x3e8] sm:$0xff]
    %v1647 = vld [vmem:[#allocation7 + $0x3f0] sm:$0xff]
    %v1648 = vld [vmem:[#allocation7 + $0x3f8] sm:$0xff]
    %v1649 = vld [vmem:[#allocation7 + $0x400] sm:$0xff]
    %v1650 = vld [vmem:[#allocation7 + $0x408] sm:$0xff]
    %v1651 = vld [vmem:[#allocation7 + $0x410] sm:$0xff]
    %v1652 = vld [vmem:[#allocation7 + $0x418] sm:$0xff]
    %v1653 = vld [vmem:[#allocation7 + $0x420] sm:$0xff]
    %v1654 = vld [vmem:[#allocation7 + $0x428] sm:$0xff]
    %v1655 = vld [vmem:[#allocation7 + $0x430] sm:$0xff]
    %v1656 = vld [vmem:[#allocation7 + $0x438] sm:$0xff]
    %v1657 = vld [vmem:[#allocation7 + $0x440] sm:$0xff]
    %v1658 = vld [vmem:[#allocation7 + $0x448] sm:$0xff]
    %v1659 = vld [vmem:[#allocation7 + $0x450] sm:$0xff]
    %v1660 = vld [vmem:[#allocation7 + $0x458] sm:$0xff]
    %v1661 = vld [vmem:[#allocation7 + $0x460] sm:$0xff]
    %v1662 = vld [vmem:[#allocation7 + $0x468] sm:$0xff]
    %v1663 = vld [vmem:[#allocation7 + $0x470] sm:$0xff]
    %v1664 = vld [vmem:[#allocation7 + $0x478] sm:$0xff]
    %v1665 = vld [vmem:[#allocation7 + $0x480] sm:$0xff]
    %v1666 = vld [vmem:[#allocation7 + $0x488] sm:$0xff]
    %v1667 = vld [vmem:[#allocation7 + $0x490] sm:$0xff]
    %v1668 = vld [vmem:[#allocation7 + $0x498] sm:$0xff]
    %v1669 = vld [vmem:[#allocation7 + $0x4a0] sm:$0xff]
    %v1670 = vld [vmem:[#allocation7 + $0x4a8] sm:$0xff]
    %v1671 = vld [vmem:[#allocation7 + $0x4b0] sm:$0xff]
    %v1672 = vld [vmem:[#allocation7 + $0x4b8] sm:$0xff]
    %v1673 = vld [vmem:[#allocation7 + $0x4c0] sm:$0xff]
    %v1674 = vld [vmem:[#allocation7 + $0x4c8] sm:$0xff]
    %v1675 = vld [vmem:[#allocation7 + $0x4d0] sm:$0xff]
    %v1676 = vld [vmem:[#allocation7 + $0x4d8] sm:$0xff]
    %v1677 = vld [vmem:[#allocation7 + $0x4e0] sm:$0xff]
    %v1678 = vld [vmem:[#allocation7 + $0x4e8] sm:$0xff]
    %v1679 = vld [vmem:[#allocation7 + $0x4f0] sm:$0xff]
    %v1680 = vld [vmem:[#allocation7 + $0x4f8] sm:$0xff]
    %v1681 = vld [vmem:[#allocation7 + $0x500] sm:$0xff]
    %v1682 = vld [vmem:[#allocation7 + $0x508] sm:$0xff]
    %v1683 = vld [vmem:[#allocation7 + $0x510] sm:$0xff]
    %v1684 = vld [vmem:[#allocation7 + $0x518] sm:$0xff]
    %v1685 = vld [vmem:[#allocation7 + $0x520] sm:$0xff]
    %v1686 = vld [vmem:[#allocation7 + $0x528] sm:$0xff]
    %v1687 = vld [vmem:[#allocation7 + $0x530] sm:$0xff]
    %v1688 = vld [vmem:[#allocation7 + $0x538] sm:$0xff]
    %v1689 = vld [vmem:[#allocation7 + $0x540] sm:$0xff]
    %v1690 = vld [vmem:[#allocation7 + $0x548] sm:$0xff]
    %v1691 = vld [vmem:[#allocation7 + $0x550] sm:$0xff]
    %v1692 = vld [vmem:[#allocation7 + $0x558] sm:$0xff]
    %v1693 = vld [vmem:[#allocation7 + $0x560] sm:$0xff]
    %v1694 = vld [vmem:[#allocation7 + $0x568] sm:$0xff]
    %v1695 = vld [vmem:[#allocation7 + $0x570] sm:$0xff]
    %v1696 = vld [vmem:[#allocation7 + $0x578] sm:$0xff]
    %v1697 = vld [vmem:[#allocation7 + $0x580] sm:$0xff]
    %v1698 = vld [vmem:[#allocation7 + $0x588] sm:$0xff]
    %v1699 = vld [vmem:[#allocation7 + $0x590] sm:$0xff]
    %v1700 = vld [vmem:[#allocation7 + $0x598] sm:$0xff]
    %v1701 = vld [vmem:[#allocation7 + $0x5a0] sm:$0xff]
    %v1702 = vld [vmem:[#allocation7 + $0x5a8] sm:$0xff]
    %v1703 = vld [vmem:[#allocation7 + $0x5b0] sm:$0xff]
    %v1704 = vld [vmem:[#allocation7 + $0x5b8] sm:$0xff]
    %v1705 = vld [vmem:[#allocation7 + $0x5c0] sm:$0xff]
    %v1706 = vld [vmem:[#allocation7 + $0x5c8] sm:$0xff]
    %v1707 = vld [vmem:[#allocation7 + $0x5d0] sm:$0xff]
    %v1708 = vld [vmem:[#allocation7 + $0x5d8] sm:$0xff]
    %v1709 = vld [vmem:[#allocation7 + $0x5e0] sm:$0xff]
    %v1710 = vld [vmem:[#allocation7 + $0x5e8] sm:$0xff]
    %v1711 = vld [vmem:[#allocation7 + $0x5f0] sm:$0xff]
    %v1712 = vld [vmem:[#allocation7 + $0x5f8] sm:$0xff]
    %v1713 = vld [vmem:[#allocation7 + $0x600] sm:$0xff]
    %v1714 = vld [vmem:[#allocation7 + $0x608] sm:$0xff]
    %v1715 = vld [vmem:[#allocation7 + $0x610] sm:$0xff]
    %v1716 = vld [vmem:[#allocation7 + $0x618] sm:$0xff]
    %v1717 = vld [vmem:[#allocation7 + $0x620] sm:$0xff]
    %v1718 = vld [vmem:[#allocation7 + $0x628] sm:$0xff]
    %v1719 = vld [vmem:[#allocation7 + $0x630] sm:$0xff]
    %v1720 = vld [vmem:[#allocation7 + $0x638] sm:$0xff]
    %v1721 = vld [vmem:[#allocation7 + $0x640] sm:$0xff]
    %v1722 = vld [vmem:[#allocation7 + $0x648] sm:$0xff]
    %v1723 = vld [vmem:[#allocation7 + $0x650] sm:$0xff]
    %v1724 = vld [vmem:[#allocation7 + $0x658] sm:$0xff]
    %v1725 = vld [vmem:[#allocation7 + $0x660] sm:$0xff]
    %v1726 = vld [vmem:[#allocation7 + $0x668] sm:$0xff]
    %v1727 = vld [vmem:[#allocation7 + $0x670] sm:$0xff]
    %v1728 = vld [vmem:[#allocation7 + $0x678] sm:$0xff]
    %v1729 = vld [vmem:[#allocation7 + $0x680] sm:$0xff]
    %v1730 = vld [vmem:[#allocation7 + $0x688] sm:$0xff]
    %v1731 = vld [vmem:[#allocation7 + $0x690] sm:$0xff]
    %v1732 = vld [vmem:[#allocation7 + $0x698] sm:$0xff]
    %v1733 = vld [vmem:[#allocation7 + $0x6a0] sm:$0xff]
    %v1734 = vld [vmem:[#allocation7 + $0x6a8] sm:$0xff]
    %v1735 = vld [vmem:[#allocation7 + $0x6b0] sm:$0xff]
    %v1736 = vld [vmem:[#allocation7 + $0x6b8] sm:$0xff]
    %v1737 = vld [vmem:[#allocation7 + $0x6c0] sm:$0xff]
    %v1738 = vld [vmem:[#allocation7 + $0x6c8] sm:$0xff]
    %v1739 = vld [vmem:[#allocation7 + $0x6d0] sm:$0xff]
    %v1740 = vld [vmem:[#allocation7 + $0x6d8] sm:$0xff]
    %v1741 = vld [vmem:[#allocation7 + $0x6e0] sm:$0xff]
    %v1742 = vld [vmem:[#allocation7 + $0x6e8] sm:$0xff]
    %v1743 = vld [vmem:[#allocation7 + $0x6f0] sm:$0xff]
    %v1744 = vld [vmem:[#allocation7 + $0x6f8] sm:$0xff]
    %v1745 = vld [vmem:[#allocation7 + $0x700] sm:$0xff]
    %v1746 = vld [vmem:[#allocation7 + $0x708] sm:$0xff]
    %v1747 = vld [vmem:[#allocation7 + $0x710] sm:$0xff]
    %v1748 = vld [vmem:[#allocation7 + $0x718] sm:$0xff]
    %v1749 = vld [vmem:[#allocation7 + $0x720] sm:$0xff]
    %v1750 = vld [vmem:[#allocation7 + $0x728] sm:$0xff]
    %v1751 = vld [vmem:[#allocation7 + $0x730] sm:$0xff]
    %v1752 = vld [vmem:[#allocation7 + $0x738] sm:$0xff]
    %v1753 = vld [vmem:[#allocation7 + $0x740] sm:$0xff]
    %v1754 = vld [vmem:[#allocation7 + $0x748] sm:$0xff]
    %v1755 = vld [vmem:[#allocation7 + $0x750] sm:$0xff]
    %v1756 = vld [vmem:[#allocation7 + $0x758] sm:$0xff]
    %v1757 = vld [vmem:[#allocation7 + $0x760] sm:$0xff]
    %v1758 = vld [vmem:[#allocation7 + $0x768] sm:$0xff]
    %v1759 = vld [vmem:[#allocation7 + $0x770] sm:$0xff]
    %v1760 = vld [vmem:[#allocation7 + $0x778] sm:$0xff]
    %v1761 = vld [vmem:[#allocation7 + $0x780] sm:$0xff]
    %v1762 = vld [vmem:[#allocation7 + $0x788] sm:$0xff]
    %v1763 = vld [vmem:[#allocation7 + $0x790] sm:$0xff]
    %v1764 = vld [vmem:[#allocation7 + $0x798] sm:$0xff]
    %v1765 = vld [vmem:[#allocation7 + $0x7a0] sm:$0xff]
    %v1766 = vld [vmem:[#allocation7 + $0x7a8] sm:$0xff]
    %v1767 = vld [vmem:[#allocation7 + $0x7b0] sm:$0xff]
    %v1768 = vld [vmem:[#allocation7 + $0x7b8] sm:$0xff]
    %v1769 = vld [vmem:[#allocation7 + $0x7c0] sm:$0xff]
    %v1770 = vld [vmem:[#allocation7 + $0x7c8] sm:$0xff]
    %v1771 = vld [vmem:[#allocation7 + $0x7d0] sm:$0xff]
    %v1772 = vld [vmem:[#allocation7 + $0x7d8] sm:$0xff]
    %v1773 = vld [vmem:[#allocation7 + $0x7e0] sm:$0xff]
    %v1774 = vld [vmem:[#allocation7 + $0x7e8] sm:$0xff]
    %v1775 = vld [vmem:[#allocation7 + $0x7f0] sm:$0xff]
    %v1776 = vld [vmem:[#allocation7 + $0x7f8] sm:$0xff]
    %v1777 = vld [vmem:[#allocation9] sm:$0xf]
    %v1779 = vlaneseq
    %v1780 = vshrl.u32 %v1779, 7
    %v1781 = vsub.s32 0, %v1780
    %v1782 = vrot.slane %v1777, %v1781
    %v1783 = vlaneseq
    %v1784 = vshrl.u32 %v1783, 7
    %v1785 = vsub.s32 1, %v1784
    %v1786 = vrot.slane %v1777, %v1785
    %v1787 = vlaneseq
    %v1788 = vshrl.u32 %v1787, 7
    %v1789 = vsub.s32 2, %v1788
    %v1790 = vrot.slane %v1777, %v1789
    %v1791 = vlaneseq
    %v1792 = vshrl.u32 %v1791, 7
    %v1793 = vsub.s32 3, %v1792
    %v1794 = vrot.slane %v1777, %v1793
    %1799 = vmatprep.subr.mxu0 %v1522
    %1800 = vmatpush1.msra.mxu0 %v1521
    %1801 = vmatprep.subr.mxu0 %v1526
    %1802 = vmatpush1.msra.mxu0 %v1525
    %1803 = vmatprep.subr.mxu0 %v1530
    %1804 = vmatpush1.msra.mxu0 %v1529
    %1805 = vmatprep.subr.mxu0 %v1534
    %1806 = vmatpush1.msra.mxu0 %v1533
    %1807 = vmatprep.subr.mxu0 %v1538
    %1808 = vmatpush1.msra.mxu0 %v1537
    %1809 = vmatprep.subr.mxu0 %v1542
    %1810 = vmatpush1.msra.mxu0 %v1541
    %1811 = vmatprep.subr.mxu0 %v1546
    %1812 = vmatpush1.msra.mxu0 %v1545
    %1813 = vmatprep.subr.mxu0 %v1550
    %1814 = vmatpush1.msra.mxu0 %v1549
    %1815 = vmatprep.subr.mxu0 %v1554
    %1816 = vmatpush1.msra.mxu0 %v1553
    %1817 = vmatprep.subr.mxu0 %v1558
    %1818 = vmatpush1.msra.mxu0 %v1557
    %1819 = vmatprep.subr.mxu0 %v1562
    %1820 = vmatpush1.msra.mxu0 %v1561
    %1821 = vmatprep.subr.mxu0 %v1566
    %1822 = vmatpush1.msra.mxu0 %v1565
    %1823 = vmatprep.subr.mxu0 %v1570
    %1824 = vmatpush1.msra.mxu0 %v1569
    %1825 = vmatprep.subr.mxu0 %v1574
    %1826 = vmatpush1.msra.mxu0 %v1573
    %1827 = vmatprep.subr.mxu0 %v1578
    %1828 = vmatpush1.msra.mxu0 %v1577
    %1829 = vmatprep.subr.mxu0 %v1582
    %1830 = vmatpush1.msra.mxu0 %v1581
    %1831 = vmatprep.subr.mxu0 %v1586
    %1832 = vmatpush1.msra.mxu0 %v1585
    %1833 = vmatprep.subr.mxu0 %v1590
    %1834 = vmatpush1.msra.mxu0 %v1589
    %1835 = vmatprep.subr.mxu0 %v1594
    %1836 = vmatpush1.msra.mxu0 %v1593
    %1837 = vmatprep.subr.mxu0 %v1598
    %1838 = vmatpush1.msra.mxu0 %v1597
    %1839 = vmatprep.subr.mxu0 %v1602
    %1840 = vmatpush1.msra.mxu0 %v1601
    %1841 = vmatprep.subr.mxu0 %v1606
    %1842 = vmatpush1.msra.mxu0 %v1605
    %1843 = vmatprep.subr.mxu0 %v1610
    %1844 = vmatpush1.msra.mxu0 %v1609
    %1845 = vmatprep.subr.mxu0 %v1614
    %1846 = vmatpush1.msra.mxu0 %v1613
    %1847 = vmatprep.subr.mxu0 %v1618
    %1848 = vmatpush1.msra.mxu0 %v1617
    %1849 = vmatprep.subr.mxu0 %v1622
    %1850 = vmatpush1.msra.mxu0 %v1621
    %1851 = vmatprep.subr.mxu0 %v1626
    %1852 = vmatpush1.msra.mxu0 %v1625
    %1853 = vmatprep.subr.mxu0 %v1630
    %1854 = vmatpush1.msra.mxu0 %v1629
    %1855 = vmatprep.subr.mxu0 %v1634
    %1856 = vmatpush1.msra.mxu0 %v1633
    %1857 = vmatprep.subr.mxu0 %v1638
    %1858 = vmatpush1.msra.mxu0 %v1637
    %1859 = vmatprep.subr.mxu0 %v1642
    %1860 = vmatpush1.msra.mxu0 %v1641
    %1861 = vmatprep.subr.mxu0 %v1646
    %1862 = vmatpush1.msra.mxu0 %v1645
    %1863 = vmatprep.mubr.f32.mxu0 %v1490
    %1864 = vmatmul.mubr.f32.gmra.mrb[0].mxu0 %v1489
    %v1865 = vpop.f32.mrb[0].mxu0
    %v1866 = vadd.f32 %v1782, %v1865
    %v1867 = vpop.f32.mrb[0].mxu0
    %v1868 = vadd.f32 %v1786, %v1867
    %1869 = vmatprep.mubr.f32.mxu0 %v1494
    %1870 = vmatmul.mubr.f32.gmra.mrb[0].mxu0 %v1493
    %v1871 = vpop.f32.mrb[0].mxu0
    %v1872 = vadd.f32 %v1782, %v1871
    %v1873 = vpop.f32.mrb[0].mxu0
    %v1874 = vadd.f32 %v1786, %v1873
    %1875 = vmatprep.mubr.f32.mxu0 %v1498
    %1876 = vmatmul.mubr.f32.gmra.mrb[0].mxu0 %v1497
    %v1877 = vpop.f32.mrb[0].mxu0
    %v1878 = vadd.f32 %v1782, %v1877
    %v1879 = vpop.f32.mrb[0].mxu0
    %v1880 = vadd.f32 %v1786, %v1879
    %1881 = vmatprep.mubr.f32.mxu0 %v1502
    %1882 = vmatmul.mubr.f32.gmra.mrb[0].mxu0 %v1501
    %v1883 = vpop.f32.mrb[0].mxu0
    %v1884 = vadd.f32 %v1782, %v1883
    %v1885 = vpop.f32.mrb[0].mxu0
    %v1886 = vadd.f32 %v1786, %v1885
    %1887 = vmatprep.mubr.f32.mxu0 %v1506
    %1888 = vmatmul.mubr.f32.gmra.mrb[0].mxu0 %v1505
    %v1889 = vpop.f32.mrb[0].mxu0
    %v1890 = vadd.f32 %v1782, %v1889
    %v1891 = vpop.f32.mrb[0].mxu0
    %v1892 = vadd.f32 %v1786, %v1891
    %1893 = vmatprep.mubr.f32.mxu0 %v1510
    %1894 = vmatmul.mubr.f32.gmra.mrb[0].mxu0 %v1509
    %v1895 = vpop.f32.mrb[0].mxu0
    %v1896 = vadd.f32 %v1782, %v1895
    %v1897 = vpop.f32.mrb[0].mxu0
    %v1898 = vadd.f32 %v1786, %v1897
    %1899 = vmatprep.mubr.f32.mxu0 %v1514
    %1900 = vmatmul.mubr.f32.gmra.mrb[0].mxu0 %v1513
    %v1901 = vpop.f32.mrb[0].mxu0
    %v1902 = vadd.f32 %v1782, %v1901
    %v1903 = vpop.f32.mrb[0].mxu0
    %v1904 = vadd.f32 %v1786, %v1903
    %1905 = vmatprep.mubr.f32.mxu0 %v1518
    %1906 = vmatmul.mubr.f32.gmra.mrb[0].mxu0 %v1517
    %v1907 = vpop.f32.mrb[0].mxu0
    %v1908 = vadd.f32 %v1782, %v1907
    %v1909 = vpop.f32.mrb[0].mxu0
    %v1910 = vadd.f32 %v1786, %v1909
    %1911 = vdwg.mxu0
    %1912 = vmatprep.subr.mxu0 %v1650
    %1913 = vmatpush1.msra.mxu0 %v1649
    %1914 = vmatprep.subr.mxu0 %v1654
    %1915 = vmatpush1.msra.mxu0 %v1653
    %1916 = vmatprep.subr.mxu0 %v1658
    %1917 = vmatpush1.msra.mxu0 %v1657
    %1918 = vmatprep.subr.mxu0 %v1662
    %1919 = vmatpush1.msra.mxu0 %v1661
    %1920 = vmatprep.subr.mxu0 %v1666
    %1921 = vmatpush1.msra.mxu0 %v1665
    %1922 = vmatprep.subr.mxu0 %v1670
    %1923 = vmatpush1.msra.mxu0 %v1669
    %1924 = vmatprep.subr.mxu0 %v1674
    %1925 = vmatpush1.msra.mxu0 %v1673
    %1926 = vmatprep.subr.mxu0 %v1678
    %1927 = vmatpush1.msra.mxu0 %v1677
    %1928 = vmatprep.subr.mxu0 %v1682
    %1929 = vmatpush1.msra.mxu0 %v1681
    %1930 = vmatprep.subr.mxu0 %v1686
    %1931 = vmatpush1.msra.mxu0 %v1685
    %1932 = vmatprep.subr.mxu0 %v1690
    %1933 = vmatpush1.msra.mxu0 %v1689
    %1934 = vmatprep.subr.mxu0 %v1694
    %1935 = vmatpush1.msra.mxu0 %v1693
    %1936 = vmatprep.subr.mxu0 %v1698
    %1937 = vmatpush1.msra.mxu0 %v1697
    %1938 = vmatprep.subr.mxu0 %v1702
    %1939 = vmatpush1.msra.mxu0 %v1701
    %1940 = vmatprep.subr.mxu0 %v1706
    %1941 = vmatpush1.msra.mxu0 %v1705
    %1942 = vmatprep.subr.mxu0 %v1710
    %1943 = vmatpush1.msra.mxu0 %v1709
    %1944 = vmatprep.subr.mxu0 %v1714
    %1945 = vmatpush1.msra.mxu0 %v1713
    %1946 = vmatprep.subr.mxu0 %v1718
    %1947 = vmatpush1.msra.mxu0 %v1717
    %1948 = vmatprep.subr.mxu0 %v1722
    %1949 = vmatpush1.msra.mxu0 %v1721
    %1950 = vmatprep.subr.mxu0 %v1726
    %1951 = vmatpush1.msra.mxu0 %v1725
    %1952 = vmatprep.subr.mxu0 %v1730
    %1953 = vmatpush1.msra.mxu0 %v1729
    %1954 = vmatprep.subr.mxu0 %v1734
    %1955 = vmatpush1.msra.mxu0 %v1733
    %1956 = vmatprep.subr.mxu0 %v1738
    %1957 = vmatpush1.msra.mxu0 %v1737
    %1958 = vmatprep.subr.mxu0 %v1742
    %1959 = vmatpush1.msra.mxu0 %v1741
    %1960 = vmatprep.subr.mxu0 %v1746
    %1961 = vmatpush1.msra.mxu0 %v1745
    %1962 = vmatprep.subr.mxu0 %v1750
    %1963 = vmatpush1.msra.mxu0 %v1749
    %1964 = vmatprep.subr.mxu0 %v1754
    %1965 = vmatpush1.msra.mxu0 %v1753
    %1966 = vmatprep.subr.mxu0 %v1758
    %1967 = vmatpush1.msra.mxu0 %v1757
    %1968 = vmatprep.subr.mxu0 %v1762
    %1969 = vmatpush1.msra.mxu0 %v1761
    %1970 = vmatprep.subr.mxu0 %v1766
    %1971 = vmatpush1.msra.mxu0 %v1765
    %1972 = vmatprep.subr.mxu0 %v1770
    %1973 = vmatpush1.msra.mxu0 %v1769
    %1974 = vmatprep.subr.mxu0 %v1774
    %1975 = vmatpush1.msra.mxu0 %v1773
    %1976 = vmatprep.mubr.f32.mxu0 %v1492
    %1977 = vmatmul.mubr.f32.gmra.mrb[0].mxu0 %v1491
    %v1978 = vpop.f32.mrb[0].mxu0
    %v1979 = vadd.f32 %v1866, %v1978
    %v1980 = vpop.f32.mrb[0].mxu0
    %v1981 = vadd.f32 %v1868, %v1980
    %1982 = vmatprep.mubr.f32.mxu0 %v1496
    %1983 = vmatmul.mubr.f32.gmra.mrb[0].mxu0 %v1495
    %v1984 = vpop.f32.mrb[0].mxu0
    %v1985 = vadd.f32 %v1872, %v1984
    %v1986 = vpop.f32.mrb[0].mxu0
    %v1987 = vadd.f32 %v1874, %v1986
    %1988 = vmatprep.mubr.f32.mxu0 %v1500
    %1989 = vmatmul.mubr.f32.gmra.mrb[0].mxu0 %v1499
    %v1990 = vpop.f32.mrb[0].mxu0
    %v1991 = vadd.f32 %v1878, %v1990
    %v1992 = vpop.f32.mrb[0].mxu0
    %v1993 = vadd.f32 %v1880, %v1992
    %1994 = vmatprep.mubr.f32.mxu0 %v1504
    %1995 = vmatmul.mubr.f32.gmra.mrb[0].mxu0 %v1503
    %v1996 = vpop.f32.mrb[0].mxu0
    %v1997 = vadd.f32 %v1884, %v1996
    %v1998 = vpop.f32.mrb[0].mxu0
    %v1999 = vadd.f32 %v1886, %v1998
    %2000 = vmatprep.mubr.f32.mxu0 %v1508
    %2001 = vmatmul.mubr.f32.gmra.mrb[0].mxu0 %v1507
    %v2002 = vpop.f32.mrb[0].mxu0
    %v2003 = vadd.f32 %v1890, %v2002
    %v2004 = vpop.f32.mrb[0].mxu0
    %v2005 = vadd.f32 %v1892, %v2004
    %2006 = vmatprep.mubr.f32.mxu0 %v1512
    %2007 = vmatmul.mubr.f32.gmra.mrb[0].mxu0 %v1511
    %v2008 = vpop.f32.mrb[0].mxu0
    %v2009 = vadd.f32 %v1896, %v2008
    %v2010 = vpop.f32.mrb[0].mxu0
    %v2011 = vadd.f32 %v1898, %v2010
    %2012 = vmatprep.mubr.f32.mxu0 %v1516
    %2013 = vmatmul.mubr.f32.gmra.mrb[0].mxu0 %v1515
    %v2014 = vpop.f32.mrb[0].mxu0
    %v2015 = vadd.f32 %v1902, %v2014
    %v2016 = vpop.f32.mrb[0].mxu0
    %v2017 = vadd.f32 %v1904, %v2016
    %2018 = vmatprep.mubr.f32.mxu0 %v1520
    %2019 = vmatmul.mubr.f32.gmra.mrb[0].mxu0 %v1519
    %v2020 = vpop.f32.mrb[0].mxu0
    %v2021 = vadd.f32 %v1908, %v2020
    %v2022 = vpop.f32.mrb[0].mxu0
    %v2023 = vadd.f32 %v1910, %v2022
    %2024 = vdwg.mxu0
    %2025 = vmatprep.subr.mxu0 %v1524
    %2026 = vmatpush1.msra.mxu0 %v1523
    %2027 = vmatprep.subr.mxu0 %v1528
    %2028 = vmatpush1.msra.mxu0 %v1527
    %2029 = vmatprep.subr.mxu0 %v1532
    %2030 = vmatpush1.msra.mxu0 %v1531
    %2031 = vmatprep.subr.mxu0 %v1536
    %2032 = vmatpush1.msra.mxu0 %v1535
    %2033 = vmatprep.subr.mxu0 %v1540
    %2034 = vmatpush1.msra.mxu0 %v1539
    %2035 = vmatprep.subr.mxu0 %v1544
    %2036 = vmatpush1.msra.mxu0 %v1543
    %2037 = vmatprep.subr.mxu0 %v1548
    %2038 = vmatpush1.msra.mxu0 %v1547
    %2039 = vmatprep.subr.mxu0 %v1552
    %2040 = vmatpush1.msra.mxu0 %v1551
    %2041 = vmatprep.subr.mxu0 %v1556
    %2042 = vmatpush1.msra.mxu0 %v1555
    %2043 = vmatprep.subr.mxu0 %v1560
    %2044 = vmatpush1.msra.mxu0 %v1559
    %2045 = vmatprep.subr.mxu0 %v1564
    %2046 = vmatpush1.msra.mxu0 %v1563
    %2047 = vmatprep.subr.mxu0 %v1568
    %2048 = vmatpush1.msra.mxu0 %v1567
    %2049 = vmatprep.subr.mxu0 %v1572
    %2050 = vmatpush1.msra.mxu0 %v1571
    %2051 = vmatprep.subr.mxu0 %v1576
    %2052 = vmatpush1.msra.mxu0 %v1575
    %2053 = vmatprep.subr.mxu0 %v1580
    %2054 = vmatpush1.msra.mxu0 %v1579
    %2055 = vmatprep.subr.mxu0 %v1584
    %2056 = vmatpush1.msra.mxu0 %v1583
    %2057 = vmatprep.subr.mxu0 %v1588
    %2058 = vmatpush1.msra.mxu0 %v1587
    %2059 = vmatprep.subr.mxu0 %v1592
    %2060 = vmatpush1.msra.mxu0 %v1591
    %2061 = vmatprep.subr.mxu0 %v1596
    %2062 = vmatpush1.msra.mxu0 %v1595
    %2063 = vmatprep.subr.mxu0 %v1600
    %2064 = vmatpush1.msra.mxu0 %v1599
    %2065 = vmatprep.subr.mxu0 %v1604
    %2066 = vmatpush1.msra.mxu0 %v1603
    %2067 = vmatprep.subr.mxu0 %v1608
    %2068 = vmatpush1.msra.mxu0 %v1607
    %2069 = vmatprep.subr.mxu0 %v1612
    %2070 = vmatpush1.msra.mxu0 %v1611
    %2071 = vmatprep.subr.mxu0 %v1616
    %2072 = vmatpush1.msra.mxu0 %v1615
    %2073 = vmatprep.subr.mxu0 %v1620
    %2074 = vmatpush1.msra.mxu0 %v1619
    %2075 = vmatprep.subr.mxu0 %v1624
    %2076 = vmatpush1.msra.mxu0 %v1623
    %2077 = vmatprep.subr.mxu0 %v1628
    %2078 = vmatpush1.msra.mxu0 %v1627
    %2079 = vmatprep.subr.mxu0 %v1632
    %2080 = vmatpush1.msra.mxu0 %v1631
    %2081 = vmatprep.subr.mxu0 %v1636
    %2082 = vmatpush1.msra.mxu0 %v1635
    %2083 = vmatprep.subr.mxu0 %v1640
    %2084 = vmatpush1.msra.mxu0 %v1639
    %2085 = vmatprep.subr.mxu0 %v1644
    %2086 = vmatpush1.msra.mxu0 %v1643
    %2087 = vmatprep.subr.mxu0 %v1648
    %2088 = vmatpush1.msra.mxu0 %v1647
    %2089 = vmatprep.mubr.f32.mxu0 %v1490
    %2090 = vmatmul.mubr.f32.gmra.mrb[0].mxu0 %v1489
    %v2091 = vpop.f32.mrb[0].mxu0
    %v2092 = vadd.f32 %v1790, %v2091
    %v2093 = vpop.f32.mrb[0].mxu0
    %v2094 = vadd.f32 %v1794, %v2093
    %2095 = vmatprep.mubr.f32.mxu0 %v1494
    %2096 = vmatmul.mubr.f32.gmra.mrb[0].mxu0 %v1493
    %v2097 = vpop.f32.mrb[0].mxu0
    %v2098 = vadd.f32 %v1790, %v2097
    %v2099 = vpop.f32.mrb[0].mxu0
    %v2100 = vadd.f32 %v1794, %v2099
    %2101 = vmatprep.mubr.f32.mxu0 %v1498
    %2102 = vmatmul.mubr.f32.gmra.mrb[0].mxu0 %v1497
    %v2103 = vpop.f32.mrb[0].mxu0
    %v2104 = vadd.f32 %v1790, %v2103
    %v2105 = vpop.f32.mrb[0].mxu0
    %v2106 = vadd.f32 %v1794, %v2105
    %2107 = vmatprep.mubr.f32.mxu0 %v1502
    %2108 = vmatmul.mubr.f32.gmra.mrb[0].mxu0 %v1501
    %v2109 = vpop.f32.mrb[0].mxu0
    %v2110 = vadd.f32 %v1790, %v2109
    %v2111 = vpop.f32.mrb[0].mxu0
    %v2112 = vadd.f32 %v1794, %v2111
    %2113 = vmatprep.mubr.f32.mxu0 %v1506
    %2114 = vmatmul.mubr.f32.gmra.mrb[0].mxu0 %v1505
    %v2115 = vpop.f32.mrb[0].mxu0
    %v2116 = vadd.f32 %v1790, %v2115
    %v2117 = vpop.f32.mrb[0].mxu0
    %v2118 = vadd.f32 %v1794, %v2117
    %2119 = vmatprep.mubr.f32.mxu0 %v1510
    %2120 = vmatmul.mubr.f32.gmra.mrb[0].mxu0 %v1509
    %v2121 = vpop.f32.mrb[0].mxu0
    %v2122 = vadd.f32 %v1790, %v2121
    %v2123 = vpop.f32.mrb[0].mxu0
    %v2124 = vadd.f32 %v1794, %v2123
    %2125 = vmatprep.mubr.f32.mxu0 %v1514
    %2126 = vmatmul.mubr.f32.gmra.mrb[0].mxu0 %v1513
    %v2127 = vpop.f32.mrb[0].mxu0
    %v2128 = vadd.f32 %v1790, %v2127
    %v2129 = vpop.f32.mrb[0].mxu0
    %v2130 = vadd.f32 %v1794, %v2129
    %2131 = vmatprep.mubr.f32.mxu0 %v1518
    %2132 = vmatmul.mubr.f32.gmra.mrb[0].mxu0 %v1517
    %v2133 = vpop.f32.mrb[0].mxu0
    %v2134 = vadd.f32 %v1790, %v2133
    %v2135 = vpop.f32.mrb[0].mxu0
    %v2136 = vadd.f32 %v1794, %v2135
    %2137 = vdwg.mxu0
    %2138 = vmatprep.subr.mxu0 %v1652
    %2139 = vmatpush1.msra.mxu0 %v1651
    %2140 = vmatprep.subr.mxu0 %v1656
    %2141 = vmatpush1.msra.mxu0 %v1655
    %2142 = vmatprep.subr.mxu0 %v1660
    %2143 = vmatpush1.msra.mxu0 %v1659
    %2144 = vmatprep.subr.mxu0 %v1664
    %2145 = vmatpush1.msra.mxu0 %v1663
    %2146 = vmatprep.subr.mxu0 %v1668
    %2147 = vmatpush1.msra.mxu0 %v1667
    %2148 = vmatprep.subr.mxu0 %v1672
    %2149 = vmatpush1.msra.mxu0 %v1671
    %2150 = vmatprep.subr.mxu0 %v1676
    %2151 = vmatpush1.msra.mxu0 %v1675
    %2152 = vmatprep.subr.mxu0 %v1680
    %2153 = vmatpush1.msra.mxu0 %v1679
    %2154 = vmatprep.subr.mxu0 %v1684
    %2155 = vmatpush1.msra.mxu0 %v1683
    %2156 = vmatprep.subr.mxu0 %v1688
    %2157 = vmatpush1.msra.mxu0 %v1687
    %2158 = vmatprep.subr.mxu0 %v1692
    %2159 = vmatpush1.msra.mxu0 %v1691
    %2160 = vmatprep.subr.mxu0 %v1696
    %2161 = vmatpush1.msra.mxu0 %v1695
    %2162 = vmatprep.subr.mxu0 %v1700
    %2163 = vmatpush1.msra.mxu0 %v1699
    %2164 = vmatprep.subr.mxu0 %v1704
    %2165 = vmatpush1.msra.mxu0 %v1703
    %2166 = vmatprep.subr.mxu0 %v1708
    %2167 = vmatpush1.msra.mxu0 %v1707
    %2168 = vmatprep.subr.mxu0 %v1712
    %2169 = vmatpush1.msra.mxu0 %v1711
    %2170 = vmatprep.subr.mxu0 %v1716
    %2171 = vmatpush1.msra.mxu0 %v1715
    %2172 = vmatprep.subr.mxu0 %v1720
    %2173 = vmatpush1.msra.mxu0 %v1719
    %2174 = vmatprep.subr.mxu0 %v1724
    %2175 = vmatpush1.msra.mxu0 %v1723
    %2176 = vmatprep.subr.mxu0 %v1728
    %2177 = vmatpush1.msra.mxu0 %v1727
    %2178 = vmatprep.subr.mxu0 %v1732
    %2179 = vmatpush1.msra.mxu0 %v1731
    %2180 = vmatprep.subr.mxu0 %v1736
    %2181 = vmatpush1.msra.mxu0 %v1735
    %2182 = vmatprep.subr.mxu0 %v1740
    %2183 = vmatpush1.msra.mxu0 %v1739
    %2184 = vmatprep.subr.mxu0 %v1744
    %2185 = vmatpush1.msra.mxu0 %v1743
    %2186 = vmatprep.subr.mxu0 %v1748
    %2187 = vmatpush1.msra.mxu0 %v1747
    %2188 = vmatprep.subr.mxu0 %v1752
    %2189 = vmatpush1.msra.mxu0 %v1751
    %2190 = vmatprep.subr.mxu0 %v1756
    %2191 = vmatpush1.msra.mxu0 %v1755
    %2192 = vmatprep.subr.mxu0 %v1760
    %2193 = vmatpush1.msra.mxu0 %v1759
    %2194 = vmatprep.subr.mxu0 %v1764
    %2195 = vmatpush1.msra.mxu0 %v1763
    %2196 = vmatprep.subr.mxu0 %v1768
    %2197 = vmatpush1.msra.mxu0 %v1767
    %2198 = vmatprep.subr.mxu0 %v1772
    %2199 = vmatpush1.msra.mxu0 %v1771
    %2200 = vmatprep.subr.mxu0 %v1776
    %2201 = vmatpush1.msra.mxu0 %v1775
    %2202 = vmatprep.mubr.f32.mxu0 %v1492
    %2203 = vmatmul.mubr.f32.gmra.mrb[0].mxu0 %v1491
    %v2204 = vpop.f32.mrb[0].mxu0
    %v2205 = vadd.f32 %v2092, %v2204
    %v2206 = vpop.f32.mrb[0].mxu0
    %v2207 = vadd.f32 %v2094, %v2206
    %2208 = vmatprep.mubr.f32.mxu0 %v1496
    %2209 = vmatmul.mubr.f32.gmra.mrb[0].mxu0 %v1495
    %v2210 = vpop.f32.mrb[0].mxu0
    %v2211 = vadd.f32 %v2098, %v2210
    %v2212 = vpop.f32.mrb[0].mxu0
    %v2213 = vadd.f32 %v2100, %v2212
    %2214 = vmatprep.mubr.f32.mxu0 %v1500
    %2215 = vmatmul.mubr.f32.gmra.mrb[0].mxu0 %v1499
    %v2216 = vpop.f32.mrb[0].mxu0
    %v2217 = vadd.f32 %v2104, %v2216
    %v2218 = vpop.f32.mrb[0].mxu0
    %v2219 = vadd.f32 %v2106, %v2218
    %2220 = vmatprep.mubr.f32.mxu0 %v1504
    %2221 = vmatmul.mubr.f32.gmra.mrb[0].mxu0 %v1503
    %v2222 = vpop.f32.mrb[0].mxu0
    %v2223 = vadd.f32 %v2110, %v2222
    %v2224 = vpop.f32.mrb[0].mxu0
    %v2225 = vadd.f32 %v2112, %v2224
    %2226 = vmatprep.mubr.f32.mxu0 %v1508
    %2227 = vmatmul.mubr.f32.gmra.mrb[0].mxu0 %v1507
    %v2228 = vpop.f32.mrb[0].mxu0
    %v2229 = vadd.f32 %v2116, %v2228
    %v2230 = vpop.f32.mrb[0].mxu0
    %v2231 = vadd.f32 %v2118, %v2230
    %2232 = vmatprep.mubr.f32.mxu0 %v1512
    %2233 = vmatmul.mubr.f32.gmra.mrb[0].mxu0 %v1511
    %v2234 = vpop.f32.mrb[0].mxu0
    %v2235 = vadd.f32 %v2122, %v2234
    %v2236 = vpop.f32.mrb[0].mxu0
    %v2237 = vadd.f32 %v2124, %v2236
    %2238 = vmatprep.mubr.f32.mxu0 %v1516
    %2239 = vmatmul.mubr.f32.gmra.mrb[0].mxu0 %v1515
    %v2240 = vpop.f32.mrb[0].mxu0
    %v2241 = vadd.f32 %v2128, %v2240
    %v2242 = vpop.f32.mrb[0].mxu0
    %v2243 = vadd.f32 %v2130, %v2242
    %2244 = vmatprep.mubr.f32.mxu0 %v1520
    %2245 = vmatmul.mubr.f32.gmra.mrb[0].mxu0 %v1519
    %v2246 = vpop.f32.mrb[0].mxu0
    %v2247 = vadd.f32 %v2134, %v2246
    %v2248 = vpop.f32.mrb[0].mxu0
    %v2249 = vadd.f32 %v2136, %v2248
    %2250 = vdwg.mxu0
    %v2251 = vmax.f32 %v1979, 0.0
    %v2252 = vmax.f32 %v1981, 0.0
    %v2253 = vmax.f32 %v2205, 0.0
    %v2254 = vmax.f32 %v2207, 0.0
    %v2255 = vmax.f32 %v1985, 0.0
    %v2256 = vmax.f32 %v1987, 0.0
    %v2257 = vmax.f32 %v2211, 0.0
    %v2258 = vmax.f32 %v2213, 0.0
    %v2259 = vmax.f32 %v1991, 0.0
    %v2260 = vmax.f32 %v1993, 0.0
    %v2261 = vmax.f32 %v2217, 0.0
    %v2262 = vmax.f32 %v2219, 0.0
    %v2263 = vmax.f32 %v1997, 0.0
    %v2264 = vmax.f32 %v1999, 0.0
    %v2265 = vmax.f32 %v2223, 0.0
    %v2266 = vmax.f32 %v2225, 0.0
    %v2267 = vmax.f32 %v2003, 0.0
    %v2268 = vmax.f32 %v2005, 0.0
    %v2269 = vmax.f32 %v2229, 0.0
    %v2270 = vmax.f32 %v2231, 0.0
    %v2271 = vmax.f32 %v2009, 0.0
    %v2272 = vmax.f32 %v2011, 0.0
    %v2273 = vmax.f32 %v2235, 0.0
    %v2274 = vmax.f32 %v2237, 0.0
    %v2275 = vmax.f32 %v2015, 0.0
    %v2276 = vmax.f32 %v2017, 0.0
    %v2277 = vmax.f32 %v2241, 0.0
    %v2278 = vmax.f32 %v2243, 0.0
    %v2279 = vmax.f32 %v2021, 0.0
    %v2280 = vmax.f32 %v2023, 0.0
    %v2281 = vmax.f32 %v2247, 0.0
    %v2282 = vmax.f32 %v2249, 0.0
    %v2283 = vld [vmem:[%s5] sm:$0xff]
    %v2284 = vld [vmem:[%s5 + $0x8] sm:$0xff]
    %v2285 = vld [vmem:[%s5 + $0x10] sm:$0xff]
    %v2286 = vld [vmem:[%s5 + $0x18] sm:$0xff]
    %v2287 = vld [vmem:[%s5 + $0x20] sm:$0xff]
    %v2288 = vld [vmem:[%s5 + $0x28] sm:$0xff]
    %v2289 = vld [vmem:[%s5 + $0x30] sm:$0xff]
    %v2290 = vld [vmem:[%s5 + $0x38] sm:$0xff]
    %v2291 = vld [vmem:[%s5 + $0x40] sm:$0xff]
    %v2292 = vld [vmem:[%s5 + $0x48] sm:$0xff]
    %v2293 = vld [vmem:[%s5 + $0x50] sm:$0xff]
    %v2294 = vld [vmem:[%s5 + $0x58] sm:$0xff]
    %v2295 = vld [vmem:[%s5 + $0x60] sm:$0xff]
    %v2296 = vld [vmem:[%s5 + $0x68] sm:$0xff]
    %v2297 = vld [vmem:[%s5 + $0x70] sm:$0xff]
    %v2298 = vld [vmem:[%s5 + $0x78] sm:$0xff]
    %v2299 = vld [vmem:[%s5 + $0x80] sm:$0xff]
    %v2300 = vld [vmem:[%s5 + $0x88] sm:$0xff]
    %v2301 = vld [vmem:[%s5 + $0x90] sm:$0xff]
    %v2302 = vld [vmem:[%s5 + $0x98] sm:$0xff]
    %v2303 = vld [vmem:[%s5 + $0xa0] sm:$0xff]
    %v2304 = vld [vmem:[%s5 + $0xa8] sm:$0xff]
    %v2305 = vld [vmem:[%s5 + $0xb0] sm:$0xff]
    %v2306 = vld [vmem:[%s5 + $0xb8] sm:$0xff]
    %v2307 = vld [vmem:[%s5 + $0xc0] sm:$0xff]
    %v2308 = vld [vmem:[%s5 + $0xc8] sm:$0xff]
    %v2309 = vld [vmem:[%s5 + $0xd0] sm:$0xff]
    %v2310 = vld [vmem:[%s5 + $0xd8] sm:$0xff]
    %v2311 = vld [vmem:[%s5 + $0xe0] sm:$0xff]
    %v2312 = vld [vmem:[%s5 + $0xe8] sm:$0xff]
    %v2313 = vld [vmem:[%s5 + $0xf0] sm:$0xff]
    %v2314 = vld [vmem:[%s5 + $0xf8] sm:$0xff]
    %v2315 = vld [vmem:[%s5 + $0x100] sm:$0xff]
    %v2316 = vld [vmem:[%s5 + $0x108] sm:$0xff]
    %v2317 = vld [vmem:[%s5 + $0x110] sm:$0xff]
    %v2318 = vld [vmem:[%s5 + $0x118] sm:$0xff]
    %v2319 = vld [vmem:[%s5 + $0x120] sm:$0xff]
    %v2320 = vld [vmem:[%s5 + $0x128] sm:$0xff]
    %v2321 = vld [vmem:[%s5 + $0x130] sm:$0xff]
    %v2322 = vld [vmem:[%s5 + $0x138] sm:$0xff]
    %v2323 = vld [vmem:[%s5 + $0x140] sm:$0xff]
    %v2324 = vld [vmem:[%s5 + $0x148] sm:$0xff]
    %v2325 = vld [vmem:[%s5 + $0x150] sm:$0xff]
    %v2326 = vld [vmem:[%s5 + $0x158] sm:$0xff]
    %v2327 = vld [vmem:[%s5 + $0x160] sm:$0xff]
    %v2328 = vld [vmem:[%s5 + $0x168] sm:$0xff]
    %v2329 = vld [vmem:[%s5 + $0x170] sm:$0xff]
    %v2330 = vld [vmem:[%s5 + $0x178] sm:$0xff]
    %v2331 = vld [vmem:[%s5 + $0x180] sm:$0xff]
    %v2332 = vld [vmem:[%s5 + $0x188] sm:$0xff]
    %v2333 = vld [vmem:[%s5 + $0x190] sm:$0xff]
    %v2334 = vld [vmem:[%s5 + $0x198] sm:$0xff]
    %v2335 = vld [vmem:[%s5 + $0x1a0] sm:$0xff]
    %v2336 = vld [vmem:[%s5 + $0x1a8] sm:$0xff]
    %v2337 = vld [vmem:[%s5 + $0x1b0] sm:$0xff]
    %v2338 = vld [vmem:[%s5 + $0x1b8] sm:$0xff]
    %v2339 = vld [vmem:[%s5 + $0x1c0] sm:$0xff]
    %v2340 = vld [vmem:[%s5 + $0x1c8] sm:$0xff]
    %v2341 = vld [vmem:[%s5 + $0x1d0] sm:$0xff]
    %v2342 = vld [vmem:[%s5 + $0x1d8] sm:$0xff]
    %v2343 = vld [vmem:[%s5 + $0x1e0] sm:$0xff]
    %v2344 = vld [vmem:[%s5 + $0x1e8] sm:$0xff]
    %v2345 = vld [vmem:[%s5 + $0x1f0] sm:$0xff]
    %v2346 = vld [vmem:[%s5 + $0x1f8] sm:$0xff]
    %v2347 = vld [vmem:[%s6] sm:$0x1]
    %v2349 = vlaneseq
    %v2350 = vshrl.u32 %v2349, 7
    %v2351 = vsub.s32 0, %v2350
    %v2352 = vrot.slane %v2347, %v2351
    %2354 = vmatprep.subr.mxu0 0.0
    %2355 = vmatpush1.msra.mxu0 %v2283
    %2356 = vmatprep.subr.mxu0 0.0
    %2357 = vmatpush1.msra.mxu0 %v2284
    %2358 = vmatprep.subr.mxu0 0.0
    %2359 = vmatpush1.msra.mxu0 %v2285
    %2360 = vmatprep.subr.mxu0 0.0
    %2361 = vmatpush1.msra.mxu0 %v2286
    %2362 = vmatprep.subr.mxu0 0.0
    %2363 = vmatpush1.msra.mxu0 %v2287
    %2364 = vmatprep.subr.mxu0 0.0
    %2365 = vmatpush1.msra.mxu0 %v2288
    %2366 = vmatprep.subr.mxu0 0.0
    %2367 = vmatpush1.msra.mxu0 %v2289
    %2368 = vmatprep.subr.mxu0 0.0
    %2369 = vmatpush1.msra.mxu0 %v2290
    %2370 = vmatprep.subr.mxu0 0.0
    %2371 = vmatpush1.msra.mxu0 %v2291
    %2372 = vmatprep.subr.mxu0 0.0
    %2373 = vmatpush1.msra.mxu0 %v2292
    %2374 = vmatprep.subr.mxu0 0.0
    %2375 = vmatpush1.msra.mxu0 %v2293
    %2376 = vmatprep.subr.mxu0 0.0
    %2377 = vmatpush1.msra.mxu0 %v2294
    %2378 = vmatprep.subr.mxu0 0.0
    %2379 = vmatpush1.msra.mxu0 %v2295
    %2380 = vmatprep.subr.mxu0 0.0
    %2381 = vmatpush1.msra.mxu0 %v2296
    %2382 = vmatprep.subr.mxu0 0.0
    %2383 = vmatpush1.msra.mxu0 %v2297
    %2384 = vmatprep.subr.mxu0 0.0
    %2385 = vmatpush1.msra.mxu0 %v2298
    %2386 = vmatprep.subr.mxu0 0.0
    %2387 = vmatpush1.msra.mxu0 %v2299
    %2388 = vmatprep.subr.mxu0 0.0
    %2389 = vmatpush1.msra.mxu0 %v2300
    %2390 = vmatprep.subr.mxu0 0.0
    %2391 = vmatpush1.msra.mxu0 %v2301
    %2392 = vmatprep.subr.mxu0 0.0
    %2393 = vmatpush1.msra.mxu0 %v2302
    %2394 = vmatprep.subr.mxu0 0.0
    %2395 = vmatpush1.msra.mxu0 %v2303
    %2396 = vmatprep.subr.mxu0 0.0
    %2397 = vmatpush1.msra.mxu0 %v2304
    %2398 = vmatprep.subr.mxu0 0.0
    %2399 = vmatpush1.msra.mxu0 %v2305
    %2400 = vmatprep.subr.mxu0 0.0
    %2401 = vmatpush1.msra.mxu0 %v2306
    %2402 = vmatprep.subr.mxu0 0.0
    %2403 = vmatpush1.msra.mxu0 %v2307
    %2404 = vmatprep.subr.mxu0 0.0
    %2405 = vmatpush1.msra.mxu0 %v2308
    %2406 = vmatprep.subr.mxu0 0.0
    %2407 = vmatpush1.msra.mxu0 %v2309
    %2408 = vmatprep.subr.mxu0 0.0
    %2409 = vmatpush1.msra.mxu0 %v2310
    %2410 = vmatprep.subr.mxu0 0.0
    %2411 = vmatpush1.msra.mxu0 %v2311
    %2412 = vmatprep.subr.mxu0 0.0
    %2413 = vmatpush1.msra.mxu0 %v2312
    %2414 = vmatprep.subr.mxu0 0.0
    %2415 = vmatpush1.msra.mxu0 %v2313
    %2416 = vmatprep.subr.mxu0 0.0
    %2417 = vmatpush1.msra.mxu0 %v2314
    %2418 = vmatprep.mubr.f32.mxu0 %v2252
    %2419 = vmatmul.mubr.f32.gmra.mrb[0].mxu0 %v2251
    %v2420 = vpop.f32.mrb[0].mxu0
    %v2421 = vadd.f32 %v2352, %v2420
    %v2422 = vpop.f32.mrb[0].mxu0
    %2423 = vmatprep.mubr.f32.mxu0 %v2256
    %2424 = vmatmul.mubr.f32.gmra.mrb[0].mxu0 %v2255
    %v2425 = vpop.f32.mrb[0].mxu0
    %v2426 = vadd.f32 %v2352, %v2425
    %v2427 = vpop.f32.mrb[0].mxu0
    %2428 = vmatprep.mubr.f32.mxu0 %v2260
    %2429 = vmatmul.mubr.f32.gmra.mrb[0].mxu0 %v2259
    %v2430 = vpop.f32.mrb[0].mxu0
    %v2431 = vadd.f32 %v2352, %v2430
    %v2432 = vpop.f32.mrb[0].mxu0
    %2433 = vmatprep.mubr.f32.mxu0 %v2264
    %2434 = vmatmul.mubr.f32.gmra.mrb[0].mxu0 %v2263
    %v2435 = vpop.f32.mrb[0].mxu0
    %v2436 = vadd.f32 %v2352, %v2435
    %v2437 = vpop.f32.mrb[0].mxu0
    %2438 = vmatprep.mubr.f32.mxu0 %v2268
    %2439 = vmatmul.mubr.f32.gmra.mrb[0].mxu0 %v2267
    %v2440 = vpop.f32.mrb[0].mxu0
    %v2441 = vadd.f32 %v2352, %v2440
    %v2442 = vpop.f32.mrb[0].mxu0
    %2443 = vmatprep.mubr.f32.mxu0 %v2272
    %2444 = vmatmul.mubr.f32.gmra.mrb[0].mxu0 %v2271
    %v2445 = vpop.f32.mrb[0].mxu0
    %v2446 = vadd.f32 %v2352, %v2445
    %v2447 = vpop.f32.mrb[0].mxu0
    %2448 = vmatprep.mubr.f32.mxu0 %v2276
    %2449 = vmatmul.mubr.f32.gmra.mrb[0].mxu0 %v2275
    %v2450 = vpop.f32.mrb[0].mxu0
    %v2451 = vadd.f32 %v2352, %v2450
    %v2452 = vpop.f32.mrb[0].mxu0
    %2453 = vmatprep.mubr.f32.mxu0 %v2280
    %2454 = vmatmul.mubr.f32.gmra.mrb[0].mxu0 %v2279
    %v2455 = vpop.f32.mrb[0].mxu0
    %v2456 = vadd.f32 %v2352, %v2455
    %v2457 = vpop.f32.mrb[0].mxu0
    %2458 = vdwg.mxu0
    %2459 = vmatprep.subr.mxu0 0.0
    %2460 = vmatpush1.msra.mxu0 %v2315
    %2461 = vmatprep.subr.mxu0 0.0
    %2462 = vmatpush1.msra.mxu0 %v2316
    %2463 = vmatprep.subr.mxu0 0.0
    %2464 = vmatpush1.msra.mxu0 %v2317
    %2465 = vmatprep.subr.mxu0 0.0
    %2466 = vmatpush1.msra.mxu0 %v2318
    %2467 = vmatprep.subr.mxu0 0.0
    %2468 = vmatpush1.msra.mxu0 %v2319
    %2469 = vmatprep.subr.mxu0 0.0
    %2470 = vmatpush1.msra.mxu0 %v2320
    %2471 = vmatprep.subr.mxu0 0.0
    %2472 = vmatpush1.msra.mxu0 %v2321
    %2473 = vmatprep.subr.mxu0 0.0
    %2474 = vmatpush1.msra.mxu0 %v2322
    %2475 = vmatprep.subr.mxu0 0.0
    %2476 = vmatpush1.msra.mxu0 %v2323
    %2477 = vmatprep.subr.mxu0 0.0
    %2478 = vmatpush1.msra.mxu0 %v2324
    %2479 = vmatprep.subr.mxu0 0.0
    %2480 = vmatpush1.msra.mxu0 %v2325
    %2481 = vmatprep.subr.mxu0 0.0
    %2482 = vmatpush1.msra.mxu0 %v2326
    %2483 = vmatprep.subr.mxu0 0.0
    %2484 = vmatpush1.msra.mxu0 %v2327
    %2485 = vmatprep.subr.mxu0 0.0
    %2486 = vmatpush1.msra.mxu0 %v2328
    %2487 = vmatprep.subr.mxu0 0.0
    %2488 = vmatpush1.msra.mxu0 %v2329
    %2489 = vmatprep.subr.mxu0 0.0
    %2490 = vmatpush1.msra.mxu0 %v2330
    %2491 = vmatprep.subr.mxu0 0.0
    %2492 = vmatpush1.msra.mxu0 %v2331
    %2493 = vmatprep.subr.mxu0 0.0
    %2494 = vmatpush1.msra.mxu0 %v2332
    %2495 = vmatprep.subr.mxu0 0.0
    %2496 = vmatpush1.msra.mxu0 %v2333
    %2497 = vmatprep.subr.mxu0 0.0
    %2498 = vmatpush1.msra.mxu0 %v2334
    %2499 = vmatprep.subr.mxu0 0.0
    %2500 = vmatpush1.msra.mxu0 %v2335
    %2501 = vmatprep.subr.mxu0 0.0
    %2502 = vmatpush1.msra.mxu0 %v2336
    %2503 = vmatprep.subr.mxu0 0.0
    %2504 = vmatpush1.msra.mxu0 %v2337
    %2505 = vmatprep.subr.mxu0 0.0
    %2506 = vmatpush1.msra.mxu0 %v2338
    %2507 = vmatprep.subr.mxu0 0.0
    %2508 = vmatpush1.msra.mxu0 %v2339
    %2509 = vmatprep.subr.mxu0 0.0
    %2510 = vmatpush1.msra.mxu0 %v2340
    %2511 = vmatprep.subr.mxu0 0.0
    %2512 = vmatpush1.msra.mxu0 %v2341
    %2513 = vmatprep.subr.mxu0 0.0
    %2514 = vmatpush1.msra.mxu0 %v2342
    %2515 = vmatprep.subr.mxu0 0.0
    %2516 = vmatpush1.msra.mxu0 %v2343
    %2517 = vmatprep.subr.mxu0 0.0
    %2518 = vmatpush1.msra.mxu0 %v2344
    %2519 = vmatprep.subr.mxu0 0.0
    %2520 = vmatpush1.msra.mxu0 %v2345
    %2521 = vmatprep.subr.mxu0 0.0
    %2522 = vmatpush1.msra.mxu0 %v2346
    %2523 = vmatprep.mubr.f32.mxu0 %v2254
    %2524 = vmatmul.mubr.f32.gmra.mrb[0].mxu0 %v2253
    %v2525 = vpop.f32.mrb[0].mxu0
    %v2526 = vadd.f32 %v2421, %v2525
    %v2527 = vpop.f32.mrb[0].mxu0
    %2528 = vmatprep.mubr.f32.mxu0 %v2258
    %2529 = vmatmul.mubr.f32.gmra.mrb[0].mxu0 %v2257
    %v2530 = vpop.f32.mrb[0].mxu0
    %v2531 = vadd.f32 %v2426, %v2530
    %v2532 = vpop.f32.mrb[0].mxu0
    %2533 = vmatprep.mubr.f32.mxu0 %v2262
    %2534 = vmatmul.mubr.f32.gmra.mrb[0].mxu0 %v2261
    %v2535 = vpop.f32.mrb[0].mxu0
    %v2536 = vadd.f32 %v2431, %v2535
    %v2537 = vpop.f32.mrb[0].mxu0
    %2538 = vmatprep.mubr.f32.mxu0 %v2266
    %2539 = vmatmul.mubr.f32.gmra.mrb[0].mxu0 %v2265
    %v2540 = vpop.f32.mrb[0].mxu0
    %v2541 = vadd.f32 %v2436, %v2540
    %v2542 = vpop.f32.mrb[0].mxu0
    %2543 = vmatprep.mubr.f32.mxu0 %v2270
    %2544 = vmatmul.mubr.f32.gmra.mrb[0].mxu0 %v2269
    %v2545 = vpop.f32.mrb[0].mxu0
    %v2546 = vadd.f32 %v2441, %v2545
    %v2547 = vpop.f32.mrb[0].mxu0
    %2548 = vmatprep.mubr.f32.mxu0 %v2274
    %2549 = vmatmul.mubr.f32.gmra.mrb[0].mxu0 %v2273
    %v2550 = vpop.f32.mrb[0].mxu0
    %v2551 = vadd.f32 %v2446, %v2550
    %v2552 = vpop.f32.mrb[0].mxu0
    %2553 = vmatprep.mubr.f32.mxu0 %v2278
    %2554 = vmatmul.mubr.f32.gmra.mrb[0].mxu0 %v2277
    %v2555 = vpop.f32.mrb[0].mxu0
    %v2556 = vadd.f32 %v2451, %v2555
    %v2557 = vpop.f32.mrb[0].mxu0
    %2558 = vmatprep.mubr.f32.mxu0 %v2282
    %2559 = vmatmul.mubr.f32.gmra.mrb[0].mxu0 %v2281
    %v2560 = vpop.f32.mrb[0].mxu0
    %v2561 = vadd.f32 %v2456, %v2560
    %v2562 = vpop.f32.mrb[0].mxu0
    %2563 = vdwg.mxu0
    %2564 = vst [vmem:[%s7] sm:$0xff] %v2526
    %2565 = vst [vmem:[%s7 + $0x8] sm:$0xff] %v2531
    %2566 = vst [vmem:[%s7 + $0x10] sm:$0xff] %v2536
    %2567 = vst [vmem:[%s7 + $0x18] sm:$0xff] %v2541
    %2568 = vst [vmem:[%s7 + $0x20] sm:$0xff] %v2546
    %2569 = vst [vmem:[%s7 + $0x28] sm:$0xff] %v2551
    %2570 = vst [vmem:[%s7 + $0x30] sm:$0xff] %v2556
    %2571 = vst [vmem:[%s7 + $0x38] sm:$0xff] %v2561
    // Predicated region
    $region50: #{_mlp_forward_impl.1} parent=1 // pred_check
      _
    $region51: #{_mlp_forward_impl.1} parent=1 // pred_check_branch
      %2573 = sbr.rel (0) target = $region53
    $region52: #{_mlp_forward_impl.1} parent=1 // pred_region
      _
    $region53: #{_mlp_forward_impl.1} parent=1 // pred_fallthru
      _
    // Predicated region
    $region54: #{_mlp_forward_impl.1} parent=1 // pred_check
      _
    $region55: #{_mlp_forward_impl.1} parent=1 // pred_check_branch
      %2575 = sbr.rel (0) target = $region57
    $region56: #{_mlp_forward_impl.1} parent=1 // pred_region
      _
    $region57: #{_mlp_forward_impl.1} parent=1 // pred_fallthru
      _
    %2576 = vsyncpa [#allocation3], 1
    %2577 = vsyncpa [#allocation5], 1
    %2578 = vsyncpa [#allocation8], 1

</llo_original>
